<compile_context>
chip_gen: v7x
topology: tpu7x:2x2x1
jax: 0.10.0
libtpu: 0.0.40
codegen_flags: <defaults>
</compile_context>

<pallas_src>
import functools

import numpy as np
import jax
import jax.numpy as jnp
from jax.experimental import pallas as pl
from jax.experimental.pallas import tpu as pltpu

LANE = 128       # TPU lane width; all feature/action dims are padded to this.
SUBLANE = 8
N_ACTIONS_MM = 3
N_ACTIONS_EXPLORE = 5


def _round_up(x, m):
    return ((x + m - 1) // m) * m


def _pad2(a, rows, cols):
    out = np.zeros((rows, cols), np.float32)
    a = np.asarray(a, np.float32)
    out[: a.shape[0], : a.shape[1]] = a
    return out


# ----------------------------------------------------------------------------
# Fused Pallas kernel: GCN trunk + mm head + explore head, single invocation.
# ----------------------------------------------------------------------------
def _fused_gnn_kernel(adj_ref, x0_ref, gcn_w_ref, gcn_b_ref,
                      gh_ref, gt_ref, r_ref,
                      mm_w1_ref, mm_b1_ref, mm_w2_ref, mm_b2_ref,
                      mm_wav_ref, mm_bav_ref,
                      ga_ref,
                      ex_w1_ref, ex_b1_ref, ex_w2_ref, ex_b2_ref,
                      ex_wav_ref, ex_bav_ref,
                      qmm_ref, qex_ref,
                      *, inv_n_mm, inv_n_ex):
    f32 = jnp.float32
    a = adj_ref[...]
    x = x0_ref[...]

    # --- GCN trunk: X = relu(A @ (X @ W_l) + b_l) ---
    # The reference loop applies ReLU (+ eval-mode dropout = identity) after
    # EVERY layer, including the last; we match that exactly.
    for li in range(gcn_w_ref.shape[0]):
        xw = jnp.dot(x, gcn_w_ref[li], preferred_element_type=f32)
        x = jnp.maximum(jnp.dot(a, xw, preferred_element_type=f32) + gcn_b_ref[li], 0.0)

    def dueling_tail(z, w2, b2, wav_ref, bav_ref, inv_n):
        # z: relu'd first hidden layer, lane-padded to 128 (padded lanes == 0).
        z = jnp.maximum(jnp.dot(z, w2, preferred_element_type=f32) + b2, 0.0)
        # advantage head: padded action lanes are exactly zero (zero-padded W/b),
        # so sum(adv) * (1/n_actions) is the true mean over real actions.
        adv = jnp.dot(z, wav_ref[0], preferred_element_type=f32) + bav_ref[0]
        # value head: weight is lane-broadcast so every lane already holds V.
        val = jnp.dot(z, wav_ref[1], preferred_element_type=f32) + bav_ref[1]
        return val + adv - jnp.sum(adv, axis=-1, keepdims=True) * inv_n

    # --- mm head: [h ; r ; t] triples via one-hot gathers on the MXU. The
    # first Linear is split into three 128-wide row-blocks (h/r/t feature
    # blocks) so no lane concatenation is ever materialized. ---
    h = jnp.dot(gh_ref[...], x, preferred_element_type=f32)
    t = jnp.dot(gt_ref[...], x, preferred_element_type=f32)
    z_mm = (jnp.dot(h, mm_w1_ref[0], preferred_element_type=f32)
            + jnp.dot(r_ref[...], mm_w1_ref[1], preferred_element_type=f32)
            + jnp.dot(t, mm_w1_ref[2], preferred_element_type=f32)
            + mm_b1_ref[...])
    z_mm = jnp.maximum(z_mm, 0.0)
    qmm_ref[...] = dueling_tail(z_mm, mm_w2_ref[...], mm_b2_ref[...],
                                mm_wav_ref, mm_bav_ref,
                                inv_n_mm).astype(qmm_ref.dtype)

    # --- explore head: agent node embedding via one-hot gather ---
    node = jnp.dot(ga_ref[...], x, preferred_element_type=f32)
    z_ex = jnp.maximum(jnp.dot(node, ex_w1_ref[...], preferred_element_type=f32)
                       + ex_b1_ref[...], 0.0)
    qex_ref[...] = dueling_tail(z_ex, ex_w2_ref[...], ex_b2_ref[...],
                                ex_wav_ref, ex_bav_ref,
                                inv_n_ex).astype(qex_ref.dtype)


def _fused_gnn_call(adj, x0, gcn_w, gcn_b, gh, gt, r_sel,
                    mm_w1, mm_b1, mm_w2, mm_b2, mm_wav, mm_bav,
                    ga, ex_w1, ex_b1, ex_w2, ex_b2, ex_wav, ex_bav):
    args = (adj, x0, gcn_w, gcn_b, gh, gt, r_sel,
            mm_w1, mm_b1, mm_w2, mm_b2, mm_wav, mm_bav,
            ga, ex_w1, ex_b1, ex_w2, ex_b2, ex_wav, ex_bav)

    def _full_spec(arr):
        nd = arr.ndim
        return pl.BlockSpec(tuple(arr.shape), lambda i, _nd=nd: (0,) * _nd)

    m_pad = gh.shape[0]
    b_pad = ga.shape[0]
    lane = x0.shape[1]

    kernel = functools.partial(_fused_gnn_kernel,
                               inv_n_mm=1.0 / N_ACTIONS_MM,
                               inv_n_ex=1.0 / N_ACTIONS_EXPLORE)
    return pl.pallas_call(
        kernel,
        out_shape=(jax.ShapeDtypeStruct((m_pad, lane), jnp.float32),
                   jax.ShapeDtypeStruct((b_pad, lane), jnp.float32)),
        grid=(1,),
        in_specs=[_full_spec(a) for a in args],
        out_specs=(pl.BlockSpec((m_pad, lane), lambda i: (0, 0)),
                   pl.BlockSpec((b_pad, lane), lambda i: (0, 0))),
        compiler_params=pltpu.CompilerParams(dimension_semantics=("arbitrary",)),
    )(*args)


_fused_gnn_jit = jax.jit(_fused_gnn_call)


# ----------------------------------------------------------------------------
# Deterministic parameter construction (mirrors GNN.__init__ shapes)
# ----------------------------------------------------------------------------
def xavier_normal(key, fan_in, fan_out):
    std = float(np.sqrt(2.0 / (fan_in + fan_out)))
    return jax.random.normal(key, (fan_in, fan_out), jnp.float32) * std


def make_params(key, num_entities, num_relations, d, num_layers):
    keys = jax.random.split(key, 16)
    entity_emb = xavier_normal(keys[0], num_entities, d)
    # rotational relation embeddings: [2 * num_relations, d]
    phases = 2.0 * np.pi * jax.random.uniform(keys[1], (num_relations, d // 2))
    fwd = jnp.concatenate([jnp.cos(phases), jnp.sin(phases)], axis=-1)
    bwd = jnp.concatenate([jnp.cos(phases), -jnp.sin(phases)], axis=-1)
    relation_emb = jnp.concatenate([fwd, bwd], axis=0)
    gcn = [(xavier_normal(keys[2 + li], d, d), jnp.zeros((1, d), jnp.float32))
           for li in range(num_layers)]

    def mlp_params(kbase, input_size, hidden, n_actions):
        ks = jax.random.split(kbase, 4)
        return (xavier_normal(ks[0], input_size, hidden), jnp.zeros((1, hidden), jnp.float32),
                xavier_normal(ks[1], hidden, hidden), jnp.zeros((1, hidden), jnp.float32),
                xavier_normal(ks[2], hidden, n_actions), jnp.zeros((1, n_actions), jnp.float32),
                xavier_normal(ks[3], hidden, 1), jnp.zeros((1, 1), jnp.float32))

    mlp_mm = mlp_params(keys[10], 3 * d, d, N_ACTIONS_MM)
    mlp_explore = mlp_params(keys[11], d, d, N_ACTIONS_EXPLORE)

    # Pull everything to host numpy once; all remaining glue (process_batch
    # indexing, padding, one-hot gather construction) is host-side numpy.
    as_np = lambda t: np.asarray(t, np.float32)
    entity_emb = as_np(entity_emb)
    relation_emb = as_np(relation_emb)
    gcn = [(as_np(w), as_np(b)) for (w, b) in gcn]
    mlp_mm = tuple(as_np(a) for a in mlp_mm)
    mlp_explore = tuple(as_np(a) for a in mlp_explore)
    return entity_emb, relation_emb, gcn, mlp_mm, mlp_explore


# ----------------------------------------------------------------------------
# Host-side glue: synthetic "process_batch" with integer indices (numpy only)
# ----------------------------------------------------------------------------
def build_flattened_batch(entity_emb, relation_emb, num_relations):
    # Two samples, each a tiny graph (what process_graph would have produced).
    samples = [
        dict(entities=[0, 1, 2, 3, 4, 5], relations=[0, 1, 2],
             edge_idx=np.array([[0, 1, 2, 3], [1, 2, 3, 4]]),
             edge_type=np.array([0, 1, 2, 0]),
             short_memory_idx=np.array([1, 3]), agent_entity_idx=2),
        dict(entities=[10, 11, 12, 13, 14, 15], relations=[3, 4, 5],
             edge_idx=np.array([[0, 2, 4, 5], [1, 3, 5, 0]]),
             edge_type=np.array([0, 1, 1, 2]),
             short_memory_idx=np.array([0, 2, 3]), agent_entity_idx=0),
    ]
    ent_rows, rel_rows_f, rel_rows_b = [], [], []
    edge_src_f, edge_dst_f, edge_type_f = [], [], []
    short_mem, num_short, agent_idx = [], [], []
    e_off, r_off, q_off = 0, 0, 0
    n_fwd_entities = sum(len(s["entities"]) for s in samples)
    n_fwd_relations = sum(len(s["relations"]) for s in samples)
    for s in samples:
        ent_rows.extend(s["entities"])
        for g in s["relations"]:
            rel_rows_f.append(g)                       # forward relation rows
            rel_rows_b.append(g + num_relations)       # rotational inverse rows
        edge_src_f.append(s["edge_idx"][0] + e_off)
        edge_dst_f.append(s["edge_idx"][1] + e_off)
        edge_type_f.append(s["edge_type"] + r_off)
        short_mem.append(s["short_memory_idx"] + q_off)
        num_short.append(len(s["short_memory_idx"]))
        agent_idx.append(s["agent_entity_idx"] + e_off)
        e_off += len(s["entities"])
        r_off += len(s["relations"])
        q_off += s["edge_idx"].shape[1]

    ent_rows = np.array(ent_rows)
    # entity embeddings: forward block then identical backward block
    X = np.concatenate([entity_emb[ent_rows], entity_emb[ent_rows]], axis=0)
    # relation embeddings: forward block then rotational-inverse block
    R = np.concatenate([relation_emb[np.array(rel_rows_f)],
                        relation_emb[np.array(rel_rows_b)]], axis=0)
    src_f = np.concatenate(edge_src_f)
    dst_f = np.concatenate(edge_dst_f)
    etype_f = np.concatenate(edge_type_f)
    # inverse edges: flipped direction, offset into backward entity/relation blocks
    src = np.concatenate([src_f, dst_f + n_fwd_entities])
    dst = np.concatenate([dst_f, src_f + n_fwd_entities])
    etype = np.concatenate([etype_f, etype_f + n_fwd_relations])
    short_memory_idx = np.concatenate(short_mem)
    num_short_memories = np.array(num_short)
    agent_entity_idx = np.array(agent_idx)
    return (X.astype(np.float32), R.astype(np.float32),
            src.astype(np.int64), dst.astype(np.int64), etype.astype(np.int64),
            short_memory_idx.astype(np.int64), num_short_memories,
            agent_entity_idx.astype(np.int64))


def pack_kernel_inputs(params, batch):
    """Pad everything to lane-dense (.., 128) layouts and build one-hot gathers."""
    _, _, gcn, mm_p, ex_p = params
    X, R, src, dst, etype, smi, _, agent_idx = batch
    n, d = X.shape
    n_pad = _round_up(max(n, LANE), LANE)
    m = smi.shape[0]
    m_pad = _round_up(max(m, SUBLANE), SUBLANE)
    bsz = agent_idx.shape[0]
    b_pad = _round_up(max(bsz, SUBLANE), SUBLANE)

    # node features + dense adjacency (A[dst, src] += 1, sum aggregation)
    x0 = _pad2(X, n_pad, LANE)
    adj = np.zeros((n_pad, n_pad), np.float32)
    np.add.at(adj, (dst, src), 1.0)

    # GCN layer weights / biases, stacked [L, 128, 128] / [L, 1, 128]
    gcn_w = np.stack([_pad2(w, LANE, LANE) for (w, _) in gcn])
    gcn_b = np.stack([_pad2(b, 1, LANE) for (_, b) in gcn])

    # one-hot gathers for the triple heads/tails and the agent nodes
    gh = np.zeros((m_pad, n_pad), np.float32)
    gt = np.zeros((m_pad, n_pad), np.float32)
    gh[np.arange(m), src[smi]] = 1.0
    gt[np.arange(m), dst[smi]] = 1.0
    r_sel = np.zeros((m_pad, LANE), np.float32)
    r_sel[:m, :d] = R[etype[smi]]
    ga = np.zeros((b_pad, n_pad), np.float32)
    ga[np.arange(bsz), agent_idx] = 1.0

    def pack_head(p, split_w1):
        w1, b1, w2, b2, wa, ba, wv, bv = p
        if split_w1:
            # rows of W1 correspond to the [h ; r ; t] feature blocks
            w1_k = np.stack([_pad2(w1[0:d], LANE, LANE),
                             _pad2(w1[d:2 * d], LANE, LANE),
                             _pad2(w1[2 * d:3 * d], LANE, LANE)])
        else:
            w1_k = _pad2(w1, LANE, LANE)
        b1_k = _pad2(b1, 1, LANE)
        w2_k = _pad2(w2, LANE, LANE)
        b2_k = _pad2(b2, 1, LANE)
        wa_k = _pad2(wa, LANE, LANE)                  # padded action lanes stay 0
        ba_k = _pad2(ba, 1, LANE)
        wv_k = np.zeros((LANE, LANE), np.float32)     # value weight lane-broadcast
        wv_k[:wv.shape[0], :] = np.repeat(np.asarray(wv, np.float32), LANE, axis=1)
        bv_k = np.full((1, LANE), float(bv[0, 0]), np.float32)
        wav = np.stack([wa_k, wv_k])                  # [2, 128, 128]
        bav = np.stack([ba_k, bv_k])                  # [2, 1, 128]
        return w1_k, b1_k, w2_k, b2_k, wav, bav

    mm_w1, mm_b1, mm_w2, mm_b2, mm_wav, mm_bav = pack_head(mm_p, split_w1=True)
    ex_w1, ex_b1, ex_w2, ex_b2, ex_wav, ex_bav = pack_head(ex_p, split_w1=False)

    kernel_args = (adj, x0, gcn_w, gcn_b, gh, gt, r_sel,
                   mm_w1, mm_b1, mm_w2, mm_b2, mm_wav, mm_bav,
                   ga, ex_w1, ex_b1, ex_w2, ex_b2, ex_wav, ex_bav)
    meta = dict(m=m, bsz=bsz)
    return kernel_args, meta


def gnn_forward(params):
    """Shared GCN trunk + both dueling heads in one fused Pallas call.

    Returns (q_mm_list, q_explore_list, batch, (q_mm, q_explore)) where the
    lists follow the reference per-sample semantics.
    """
    entity_emb, relation_emb, _, _, _ = params
    num_relations = relation_emb.shape[0] // 2
    batch = build_flattened_batch(entity_emb, relation_emb, num_relations)
    kernel_args, meta = pack_kernel_inputs(params, batch)

    q_mm_pad, q_ex_pad = _fused_gnn_jit(*kernel_args)
    q_mm_pad = np.asarray(jax.block_until_ready(q_mm_pad))
    q_ex_pad = np.asarray(jax.block_until_ready(q_ex_pad))

    num_short_memories = batch[6]
    q_mm = q_mm_pad[:meta["m"], :N_ACTIONS_MM]
    q_ex = q_ex_pad[:meta["bsz"], :N_ACTIONS_EXPLORE]
    starts = np.concatenate([[0], np.cumsum(num_short_memories)[:-1]])
    q_mm_list = [q_mm[s:s + c] for s, c in zip(starts, num_short_memories)]
    q_explore_list = [q_ex[i:i + 1] for i in range(meta["bsz"])]
    return q_mm_list, q_explore_list, batch, (q_mm, q_ex)
    # TODO(synk): 'qa' policy (per-question tail expansion with string
    # membership tests over qa_entities) is host-side python logic; not ported.


# ----------------------------------------------------------------------------
# Pure-numpy reference of the same forward pass (for validation)
# ----------------------------------------------------------------------------
def reference_forward(params, batch):
    _, _, gcn, mm_p, ex_p = params
    X, R, src, dst, etype, smi, _, agent_idx = batch
    n = X.shape[0]
    A = np.zeros((n, n), np.float32)
    np.add.at(A, (dst, src), 1.0)
    H = X.copy()
    for (w, b) in gcn:
        H = np.maximum(A @ (H @ w) + b, 0.0)

    def mlp(x, p):
        w1, b1, w2, b2, wa, ba, wv, bv = p
        z = np.maximum(x @ w1 + b1, 0.0)
        z = np.maximum(z @ w2 + b2, 0.0)
        adv = z @ wa + ba
        val = z @ wv + bv
        return val + adv - adv.mean(-1, keepdims=True)

    trip = np.concatenate([H[src[smi]], R[etype[smi]], H[dst[smi]]], axis=-1)
    return mlp(trip, mm_p), mlp(H[agent_idx], ex_p)


if __name__ == "__main__":
    key = jax.random.PRNGKey(0)
    NUM_ENTITIES, NUM_RELATIONS, EMB_DIM, NUM_LAYERS = 32, 8, 8, 2
    params = make_params(key, NUM_ENTITIES, NUM_RELATIONS, EMB_DIM, NUM_LAYERS)

    q_mm_list, q_explore_list, batch, (q_mm, q_ex) = gnn_forward(params)

    # Validate against the numpy reference (loose tolerance: TPU MXU f32
    # matmuls use bf16-based passes at default precision).
    q_mm_ref, q_ex_ref = reference_forward(params, batch)
    assert q_mm.shape == q_mm_ref.shape and q_ex.shape == q_ex_ref.shape
    assert np.allclose(q_mm, q_mm_ref, rtol=1e-1, atol=2e-2), "mm head mismatch"
    assert np.allclose(q_ex, q_ex_ref, rtol=1e-1, atol=2e-2), "explore head mismatch"

    assert all(q.shape[1] == N_ACTIONS_MM for q in q_mm_list)
    assert all(q.shape == (1, N_ACTIONS_EXPLORE) for q in q_explore_list)
    assert all(np.isfinite(q).all() for q in q_mm_list + q_explore_list)
    print("KERNEL_OK")
</pallas_src>

<mosaic_0001>
module attributes {stable_mosaic.version = 11 : i64} {
  func.func @_fused_gnn_kernel(%arg0: i32, %arg1: memref<128x128xf32, #tpu.memory_space<vmem>>, %arg2: memref<128x128xf32, #tpu.memory_space<vmem>>, %arg3: memref<2x128x128xf32, #tpu.memory_space<vmem>>, %arg4: memref<2x1x128xf32, #tpu.memory_space<vmem>>, %arg5: memref<8x128xf32, #tpu.memory_space<vmem>>, %arg6: memref<8x128xf32, #tpu.memory_space<vmem>>, %arg7: memref<8x128xf32, #tpu.memory_space<vmem>>, %arg8: memref<3x128x128xf32, #tpu.memory_space<vmem>>, %arg9: memref<1x128xf32, #tpu.memory_space<vmem>>, %arg10: memref<128x128xf32, #tpu.memory_space<vmem>>, %arg11: memref<1x128xf32, #tpu.memory_space<vmem>>, %arg12: memref<2x128x128xf32, #tpu.memory_space<vmem>>, %arg13: memref<2x1x128xf32, #tpu.memory_space<vmem>>, %arg14: memref<8x128xf32, #tpu.memory_space<vmem>>, %arg15: memref<128x128xf32, #tpu.memory_space<vmem>>, %arg16: memref<1x128xf32, #tpu.memory_space<vmem>>, %arg17: memref<128x128xf32, #tpu.memory_space<vmem>>, %arg18: memref<1x128xf32, #tpu.memory_space<vmem>>, %arg19: memref<2x128x128xf32, #tpu.memory_space<vmem>>, %arg20: memref<2x1x128xf32, #tpu.memory_space<vmem>>, %arg21: memref<8x128xf32, #tpu.memory_space<vmem>>, %arg22: memref<8x128xf32, #tpu.memory_space<vmem>>) attributes {dimension_semantics = [#tpu.dimension_semantics<arbitrary>], iteration_bounds = array<i64: 1>, scalar_prefetch = 0 : i64, scratch_operands = 0 : i64, tpu.core_type = #tpu.core_type<tc>, window_params = [{pipeline_mode = #tpu.pipeline_mode<synchronous>, transform_indices = @transform_0, window_bounds = array<i64: 128, 128>}, {pipeline_mode = #tpu.pipeline_mode<synchronous>, transform_indices = @transform_1, window_bounds = array<i64: 128, 128>}, {pipeline_mode = #tpu.pipeline_mode<synchronous>, transform_indices = @transform_2, window_bounds = array<i64: 2, 128, 128>}, {pipeline_mode = #tpu.pipeline_mode<synchronous>, transform_indices = @transform_3, window_bounds = array<i64: 2, 1, 128>}, {pipeline_mode = #tpu.pipeline_mode<synchronous>, transform_indices = @transform_4, window_bounds = array<i64: 8, 128>}, {pipeline_mode = #tpu.pipeline_mode<synchronous>, transform_indices = @transform_5, window_bounds = array<i64: 8, 128>}, {pipeline_mode = #tpu.pipeline_mode<synchronous>, transform_indices = @transform_6, window_bounds = array<i64: 8, 128>}, {pipeline_mode = #tpu.pipeline_mode<synchronous>, transform_indices = @transform_7, window_bounds = array<i64: 3, 128, 128>}, {pipeline_mode = #tpu.pipeline_mode<synchronous>, transform_indices = @transform_8, window_bounds = array<i64: 1, 128>}, {pipeline_mode = #tpu.pipeline_mode<synchronous>, transform_indices = @transform_9, window_bounds = array<i64: 128, 128>}, {pipeline_mode = #tpu.pipeline_mode<synchronous>, transform_indices = @transform_10, window_bounds = array<i64: 1, 128>}, {pipeline_mode = #tpu.pipeline_mode<synchronous>, transform_indices = @transform_11, window_bounds = array<i64: 2, 128, 128>}, {pipeline_mode = #tpu.pipeline_mode<synchronous>, transform_indices = @transform_12, window_bounds = array<i64: 2, 1, 128>}, {pipeline_mode = #tpu.pipeline_mode<synchronous>, transform_indices = @transform_13, window_bounds = array<i64: 8, 128>}, {pipeline_mode = #tpu.pipeline_mode<synchronous>, transform_indices = @transform_14, window_bounds = array<i64: 128, 128>}, {pipeline_mode = #tpu.pipeline_mode<synchronous>, transform_indices = @transform_15, window_bounds = array<i64: 1, 128>}, {pipeline_mode = #tpu.pipeline_mode<synchronous>, transform_indices = @transform_16, window_bounds = array<i64: 128, 128>}, {pipeline_mode = #tpu.pipeline_mode<synchronous>, transform_indices = @transform_17, window_bounds = array<i64: 1, 128>}, {pipeline_mode = #tpu.pipeline_mode<synchronous>, transform_indices = @transform_18, window_bounds = array<i64: 2, 128, 128>}, {pipeline_mode = #tpu.pipeline_mode<synchronous>, transform_indices = @transform_19, window_bounds = array<i64: 2, 1, 128>}, {pipeline_mode = #tpu.pipeline_mode<synchronous>, transform_indices = @transform_20, window_bounds = array<i64: 8, 128>}, {pipeline_mode = #tpu.pipeline_mode<synchronous>, transform_indices = @transform_21, window_bounds = array<i64: 8, 128>}]} {
    %c0 = arith.constant 0 : index
    %c0_0 = arith.constant 0 : index
    %0 = vector.load %arg1[%c0, %c0_0] : memref<128x128xf32, #tpu.memory_space<vmem>>, vector<128x128xf32>
    %c0_1 = arith.constant 0 : index
    %c0_2 = arith.constant 0 : index
    %1 = vector.load %arg2[%c0_1, %c0_2] : memref<128x128xf32, #tpu.memory_space<vmem>>, vector<128x128xf32>
    %c0_3 = arith.constant 0 : index
    %c0_4 = arith.constant 0 : index
    %c0_5 = arith.constant 0 : index
    %2 = vector.load %arg3[%c0_3, %c0_4, %c0_5] : memref<2x128x128xf32, #tpu.memory_space<vmem>>, vector<1x128x128xf32>
    %3 = vector.shape_cast %2 : vector<1x128x128xf32> to vector<128x128xf32>
    %cst = arith.constant dense<0.000000e+00> : vector<128x128xf32>
    %4 = tpu.matmul %1, %3, %cst {dimension_numbers = #tpu.dot_dimension_numbers<[1], [0], [0], [1], [0, 0, 1, 1], [], []>} : vector<128x128xf32>, vector<128x128xf32>, vector<128x128xf32> -> vector<128x128xf32>
    %cst_6 = arith.constant dense<0.000000e+00> : vector<128x128xf32>
    %5 = tpu.matmul %0, %4, %cst_6 {dimension_numbers = #tpu.dot_dimension_numbers<[1], [0], [0], [1], [0, 0, 1, 1], [], []>} : vector<128x128xf32>, vector<128x128xf32>, vector<128x128xf32> -> vector<128x128xf32>
    %c0_7 = arith.constant 0 : index
    %c0_8 = arith.constant 0 : index
    %c0_9 = arith.constant 0 : index
    %6 = vector.load %arg4[%c0_7, %c0_8, %c0_9] : memref<2x1x128xf32, #tpu.memory_space<vmem>>, vector<1x1x128xf32>
    %7 = vector.shape_cast %6 : vector<1x1x128xf32> to vector<1x128xf32>
    %8 = vector.broadcast %7 : vector<1x128xf32> to vector<128x128xf32>
    %9 = arith.addf %5, %8 : vector<128x128xf32>
    %cst_10 = arith.constant 0.000000e+00 : f32
    %10 = vector.broadcast %cst_10 : f32 to vector<128x128xf32>
    %11 = arith.maximumf %9, %10 : vector<128x128xf32>
    %c1 = arith.constant 1 : index
    %c0_11 = arith.constant 0 : index
    %c0_12 = arith.constant 0 : index
    %12 = vector.load %arg3[%c1, %c0_11, %c0_12] : memref<2x128x128xf32, #tpu.memory_space<vmem>>, vector<1x128x128xf32>
    %13 = vector.shape_cast %12 : vector<1x128x128xf32> to vector<128x128xf32>
    %cst_13 = arith.constant dense<0.000000e+00> : vector<128x128xf32>
    %14 = tpu.matmul %11, %13, %cst_13 {dimension_numbers = #tpu.dot_dimension_numbers<[1], [0], [0], [1], [0, 0, 1, 1], [], []>} : vector<128x128xf32>, vector<128x128xf32>, vector<128x128xf32> -> vector<128x128xf32>
    %cst_14 = arith.constant dense<0.000000e+00> : vector<128x128xf32>
    %15 = tpu.matmul %0, %14, %cst_14 {dimension_numbers = #tpu.dot_dimension_numbers<[1], [0], [0], [1], [0, 0, 1, 1], [], []>} : vector<128x128xf32>, vector<128x128xf32>, vector<128x128xf32> -> vector<128x128xf32>
    %c1_15 = arith.constant 1 : index
    %c0_16 = arith.constant 0 : index
    %c0_17 = arith.constant 0 : index
    %16 = vector.load %arg4[%c1_15, %c0_16, %c0_17] : memref<2x1x128xf32, #tpu.memory_space<vmem>>, vector<1x1x128xf32>
    %17 = vector.shape_cast %16 : vector<1x1x128xf32> to vector<1x128xf32>
    %18 = vector.broadcast %17 : vector<1x128xf32> to vector<128x128xf32>
    %19 = arith.addf %15, %18 : vector<128x128xf32>
    %cst_18 = arith.constant 0.000000e+00 : f32
    %20 = vector.broadcast %cst_18 : f32 to vector<128x128xf32>
    %21 = arith.maximumf %19, %20 : vector<128x128xf32>
    %c0_19 = arith.constant 0 : index
    %c0_20 = arith.constant 0 : index
    %22 = vector.load %arg5[%c0_19, %c0_20] : memref<8x128xf32, #tpu.memory_space<vmem>>, vector<8x128xf32>
    %cst_21 = arith.constant dense<0.000000e+00> : vector<8x128xf32>
    %23 = tpu.matmul %22, %21, %cst_21 {dimension_numbers = #tpu.dot_dimension_numbers<[1], [0], [0], [1], [0, 0, 1, 1], [], []>} : vector<8x128xf32>, vector<128x128xf32>, vector<8x128xf32> -> vector<8x128xf32>
    %c0_22 = arith.constant 0 : index
    %c0_23 = arith.constant 0 : index
    %24 = vector.load %arg6[%c0_22, %c0_23] : memref<8x128xf32, #tpu.memory_space<vmem>>, vector<8x128xf32>
    %cst_24 = arith.constant dense<0.000000e+00> : vector<8x128xf32>
    %25 = tpu.matmul %24, %21, %cst_24 {dimension_numbers = #tpu.dot_dimension_numbers<[1], [0], [0], [1], [0, 0, 1, 1], [], []>} : vector<8x128xf32>, vector<128x128xf32>, vector<8x128xf32> -> vector<8x128xf32>
    %c0_25 = arith.constant 0 : index
    %c0_26 = arith.constant 0 : index
    %c0_27 = arith.constant 0 : index
    %26 = vector.load %arg8[%c0_25, %c0_26, %c0_27] : memref<3x128x128xf32, #tpu.memory_space<vmem>>, vector<1x128x128xf32>
    %27 = vector.shape_cast %26 : vector<1x128x128xf32> to vector<128x128xf32>
    %cst_28 = arith.constant dense<0.000000e+00> : vector<8x128xf32>
    %28 = tpu.matmul %23, %27, %cst_28 {dimension_numbers = #tpu.dot_dimension_numbers<[1], [0], [0], [1], [0, 0, 1, 1], [], []>} : vector<8x128xf32>, vector<128x128xf32>, vector<8x128xf32> -> vector<8x128xf32>
    %c0_29 = arith.constant 0 : index
    %c0_30 = arith.constant 0 : index
    %29 = vector.load %arg7[%c0_29, %c0_30] : memref<8x128xf32, #tpu.memory_space<vmem>>, vector<8x128xf32>
    %c1_31 = arith.constant 1 : index
    %c0_32 = arith.constant 0 : index
    %c0_33 = arith.constant 0 : index
    %30 = vector.load %arg8[%c1_31, %c0_32, %c0_33] : memref<3x128x128xf32, #tpu.memory_space<vmem>>, vector<1x128x128xf32>
    %31 = vector.shape_cast %30 : vector<1x128x128xf32> to vector<128x128xf32>
    %cst_34 = arith.constant dense<0.000000e+00> : vector<8x128xf32>
    %32 = tpu.matmul %29, %31, %cst_34 {dimension_numbers = #tpu.dot_dimension_numbers<[1], [0], [0], [1], [0, 0, 1, 1], [], []>} : vector<8x128xf32>, vector<128x128xf32>, vector<8x128xf32> -> vector<8x128xf32>
    %33 = arith.addf %28, %32 : vector<8x128xf32>
    %c2 = arith.constant 2 : index
    %c0_35 = arith.constant 0 : index
    %c0_36 = arith.constant 0 : index
    %34 = vector.load %arg8[%c2, %c0_35, %c0_36] : memref<3x128x128xf32, #tpu.memory_space<vmem>>, vector<1x128x128xf32>
    %35 = vector.shape_cast %34 : vector<1x128x128xf32> to vector<128x128xf32>
    %cst_37 = arith.constant dense<0.000000e+00> : vector<8x128xf32>
    %36 = tpu.matmul %25, %35, %cst_37 {dimension_numbers = #tpu.dot_dimension_numbers<[1], [0], [0], [1], [0, 0, 1, 1], [], []>} : vector<8x128xf32>, vector<128x128xf32>, vector<8x128xf32> -> vector<8x128xf32>
    %37 = arith.addf %33, %36 : vector<8x128xf32>
    %c0_38 = arith.constant 0 : index
    %c0_39 = arith.constant 0 : index
    %38 = vector.load %arg9[%c0_38, %c0_39] : memref<1x128xf32, #tpu.memory_space<vmem>>, vector<1x128xf32>
    %39 = vector.broadcast %38 : vector<1x128xf32> to vector<8x128xf32>
    %40 = arith.addf %37, %39 : vector<8x128xf32>
    %cst_40 = arith.constant 0.000000e+00 : f32
    %41 = vector.broadcast %cst_40 : f32 to vector<8x128xf32>
    %42 = arith.maximumf %40, %41 : vector<8x128xf32>
    %c0_41 = arith.constant 0 : index
    %c0_42 = arith.constant 0 : index
    %43 = vector.load %arg10[%c0_41, %c0_42] : memref<128x128xf32, #tpu.memory_space<vmem>>, vector<128x128xf32>
    %c0_43 = arith.constant 0 : index
    %c0_44 = arith.constant 0 : index
    %44 = vector.load %arg11[%c0_43, %c0_44] : memref<1x128xf32, #tpu.memory_space<vmem>>, vector<1x128xf32>
    %cst_45 = arith.constant dense<0.000000e+00> : vector<8x128xf32>
    %45 = tpu.matmul %42, %43, %cst_45 {dimension_numbers = #tpu.dot_dimension_numbers<[1], [0], [0], [1], [0, 0, 1, 1], [], []>} : vector<8x128xf32>, vector<128x128xf32>, vector<8x128xf32> -> vector<8x128xf32>
    %46 = vector.broadcast %44 : vector<1x128xf32> to vector<8x128xf32>
    %47 = arith.addf %45, %46 : vector<8x128xf32>
    %cst_46 = arith.constant 0.000000e+00 : f32
    %48 = vector.broadcast %cst_46 : f32 to vector<8x128xf32>
    %49 = arith.maximumf %47, %48 : vector<8x128xf32>
    %c0_47 = arith.constant 0 : index
    %c0_48 = arith.constant 0 : index
    %c0_49 = arith.constant 0 : index
    %50 = vector.load %arg12[%c0_47, %c0_48, %c0_49] : memref<2x128x128xf32, #tpu.memory_space<vmem>>, vector<1x128x128xf32>
    %51 = vector.shape_cast %50 : vector<1x128x128xf32> to vector<128x128xf32>
    %cst_50 = arith.constant dense<0.000000e+00> : vector<8x128xf32>
    %52 = tpu.matmul %49, %51, %cst_50 {dimension_numbers = #tpu.dot_dimension_numbers<[1], [0], [0], [1], [0, 0, 1, 1], [], []>} : vector<8x128xf32>, vector<128x128xf32>, vector<8x128xf32> -> vector<8x128xf32>
    %c0_51 = arith.constant 0 : index
    %c0_52 = arith.constant 0 : index
    %c0_53 = arith.constant 0 : index
    %53 = vector.load %arg13[%c0_51, %c0_52, %c0_53] : memref<2x1x128xf32, #tpu.memory_space<vmem>>, vector<1x1x128xf32>
    %54 = vector.shape_cast %53 : vector<1x1x128xf32> to vector<1x128xf32>
    %55 = vector.broadcast %54 : vector<1x128xf32> to vector<8x128xf32>
    %56 = arith.addf %52, %55 : vector<8x128xf32>
    %c1_54 = arith.constant 1 : index
    %c0_55 = arith.constant 0 : index
    %c0_56 = arith.constant 0 : index
    %57 = vector.load %arg12[%c1_54, %c0_55, %c0_56] : memref<2x128x128xf32, #tpu.memory_space<vmem>>, vector<1x128x128xf32>
    %58 = vector.shape_cast %57 : vector<1x128x128xf32> to vector<128x128xf32>
    %cst_57 = arith.constant dense<0.000000e+00> : vector<8x128xf32>
    %59 = tpu.matmul %49, %58, %cst_57 {dimension_numbers = #tpu.dot_dimension_numbers<[1], [0], [0], [1], [0, 0, 1, 1], [], []>} : vector<8x128xf32>, vector<128x128xf32>, vector<8x128xf32> -> vector<8x128xf32>
    %c1_58 = arith.constant 1 : index
    %c0_59 = arith.constant 0 : index
    %c0_60 = arith.constant 0 : index
    %60 = vector.load %arg13[%c1_58, %c0_59, %c0_60] : memref<2x1x128xf32, #tpu.memory_space<vmem>>, vector<1x1x128xf32>
    %61 = vector.shape_cast %60 : vector<1x1x128xf32> to vector<1x128xf32>
    %62 = vector.broadcast %61 : vector<1x128xf32> to vector<8x128xf32>
    %63 = arith.addf %59, %62 : vector<8x128xf32>
    %64 = arith.addf %63, %56 : vector<8x128xf32>
    %cst_61 = arith.constant dense<0.000000e+00> : vector<8xf32>
    %65 = vector.multi_reduction <add>, %56, %cst_61 [1] : vector<8x128xf32> to vector<8xf32>
    %66 = vector.shape_cast %65 : vector<8xf32> to vector<8x1xf32>
    %cst_62 = arith.constant 0.333333343 : f32
    %67 = vector.broadcast %cst_62 : f32 to vector<8x1xf32>
    %68 = arith.mulf %66, %67 : vector<8x1xf32>
    %69 = vector.broadcast %68 : vector<8x1xf32> to vector<8x128xf32>
    %70 = arith.subf %64, %69 : vector<8x128xf32>
    %c0_63 = arith.constant 0 : index
    %c0_64 = arith.constant 0 : index
    %71 = vector.load %arg21[%c0_63, %c0_64] : memref<8x128xf32, #tpu.memory_space<vmem>>, vector<8x128xf32>
    tpu.vector_store %arg21[%c0_63, %c0_64], %70 {strides = array<i32>} : memref<8x128xf32, #tpu.memory_space<vmem>>, vector<8x128xf32>,
    %c0_65 = arith.constant 0 : index
    %c0_66 = arith.constant 0 : index
    %72 = vector.load %arg14[%c0_65, %c0_66] : memref<8x128xf32, #tpu.memory_space<vmem>>, vector<8x128xf32>
    %cst_67 = arith.constant dense<0.000000e+00> : vector<8x128xf32>
    %73 = tpu.matmul %72, %21, %cst_67 {dimension_numbers = #tpu.dot_dimension_numbers<[1], [0], [0], [1], [0, 0, 1, 1], [], []>} : vector<8x128xf32>, vector<128x128xf32>, vector<8x128xf32> -> vector<8x128xf32>
    %c0_68 = arith.constant 0 : index
    %c0_69 = arith.constant 0 : index
    %74 = vector.load %arg15[%c0_68, %c0_69] : memref<128x128xf32, #tpu.memory_space<vmem>>, vector<128x128xf32>
    %cst_70 = arith.constant dense<0.000000e+00> : vector<8x128xf32>
    %75 = tpu.matmul %73, %74, %cst_70 {dimension_numbers = #tpu.dot_dimension_numbers<[1], [0], [0], [1], [0, 0, 1, 1], [], []>} : vector<8x128xf32>, vector<128x128xf32>, vector<8x128xf32> -> vector<8x128xf32>
    %c0_71 = arith.constant 0 : index
    %c0_72 = arith.constant 0 : index
    %76 = vector.load %arg16[%c0_71, %c0_72] : memref<1x128xf32, #tpu.memory_space<vmem>>, vector<1x128xf32>
    %77 = vector.broadcast %76 : vector<1x128xf32> to vector<8x128xf32>
    %78 = arith.addf %75, %77 : vector<8x128xf32>
    %cst_73 = arith.constant 0.000000e+00 : f32
    %79 = vector.broadcast %cst_73 : f32 to vector<8x128xf32>
    %80 = arith.maximumf %78, %79 : vector<8x128xf32>
    %c0_74 = arith.constant 0 : index
    %c0_75 = arith.constant 0 : index
    %81 = vector.load %arg17[%c0_74, %c0_75] : memref<128x128xf32, #tpu.memory_space<vmem>>, vector<128x128xf32>
    %c0_76 = arith.constant 0 : index
    %c0_77 = arith.constant 0 : index
    %82 = vector.load %arg18[%c0_76, %c0_77] : memref<1x128xf32, #tpu.memory_space<vmem>>, vector<1x128xf32>
    %cst_78 = arith.constant dense<0.000000e+00> : vector<8x128xf32>
    %83 = tpu.matmul %80, %81, %cst_78 {dimension_numbers = #tpu.dot_dimension_numbers<[1], [0], [0], [1], [0, 0, 1, 1], [], []>} : vector<8x128xf32>, vector<128x128xf32>, vector<8x128xf32> -> vector<8x128xf32>
    %84 = vector.broadcast %82 : vector<1x128xf32> to vector<8x128xf32>
    %85 = arith.addf %83, %84 : vector<8x128xf32>
    %cst_79 = arith.constant 0.000000e+00 : f32
    %86 = vector.broadcast %cst_79 : f32 to vector<8x128xf32>
    %87 = arith.maximumf %85, %86 : vector<8x128xf32>
    %c0_80 = arith.constant 0 : index
    %c0_81 = arith.constant 0 : index
    %c0_82 = arith.constant 0 : index
    %88 = vector.load %arg19[%c0_80, %c0_81, %c0_82] : memref<2x128x128xf32, #tpu.memory_space<vmem>>, vector<1x128x128xf32>
    %89 = vector.shape_cast %88 : vector<1x128x128xf32> to vector<128x128xf32>
    %cst_83 = arith.constant dense<0.000000e+00> : vector<8x128xf32>
    %90 = tpu.matmul %87, %89, %cst_83 {dimension_numbers = #tpu.dot_dimension_numbers<[1], [0], [0], [1], [0, 0, 1, 1], [], []>} : vector<8x128xf32>, vector<128x128xf32>, vector<8x128xf32> -> vector<8x128xf32>
    %c0_84 = arith.constant 0 : index
    %c0_85 = arith.constant 0 : index
    %c0_86 = arith.constant 0 : index
    %91 = vector.load %arg20[%c0_84, %c0_85, %c0_86] : memref<2x1x128xf32, #tpu.memory_space<vmem>>, vector<1x1x128xf32>
    %92 = vector.shape_cast %91 : vector<1x1x128xf32> to vector<1x128xf32>
    %93 = vector.broadcast %92 : vector<1x128xf32> to vector<8x128xf32>
    %94 = arith.addf %90, %93 : vector<8x128xf32>
    %c1_87 = arith.constant 1 : index
    %c0_88 = arith.constant 0 : index
    %c0_89 = arith.constant 0 : index
    %95 = vector.load %arg19[%c1_87, %c0_88, %c0_89] : memref<2x128x128xf32, #tpu.memory_space<vmem>>, vector<1x128x128xf32>
    %96 = vector.shape_cast %95 : vector<1x128x128xf32> to vector<128x128xf32>
    %cst_90 = arith.constant dense<0.000000e+00> : vector<8x128xf32>
    %97 = tpu.matmul %87, %96, %cst_90 {dimension_numbers = #tpu.dot_dimension_numbers<[1], [0], [0], [1], [0, 0, 1, 1], [], []>} : vector<8x128xf32>, vector<128x128xf32>, vector<8x128xf32> -> vector<8x128xf32>
    %c1_91 = arith.constant 1 : index
    %c0_92 = arith.constant 0 : index
    %c0_93 = arith.constant 0 : index
    %98 = vector.load %arg20[%c1_91, %c0_92, %c0_93] : memref<2x1x128xf32, #tpu.memory_space<vmem>>, vector<1x1x128xf32>
    %99 = vector.shape_cast %98 : vector<1x1x128xf32> to vector<1x128xf32>
    %100 = vector.broadcast %99 : vector<1x128xf32> to vector<8x128xf32>
    %101 = arith.addf %97, %100 : vector<8x128xf32>
    %102 = arith.addf %101, %94 : vector<8x128xf32>
    %cst_94 = arith.constant dense<0.000000e+00> : vector<8xf32>
    %103 = vector.multi_reduction <add>, %94, %cst_94 [1] : vector<8x128xf32> to vector<8xf32>
    %104 = vector.shape_cast %103 : vector<8xf32> to vector<8x1xf32>
    %cst_95 = arith.constant 2.000000e-01 : f32
    %105 = vector.broadcast %cst_95 : f32 to vector<8x1xf32>
    %106 = arith.mulf %104, %105 : vector<8x1xf32>
    %107 = vector.broadcast %106 : vector<8x1xf32> to vector<8x128xf32>
    %108 = arith.subf %102, %107 : vector<8x128xf32>
    %c0_96 = arith.constant 0 : index
    %c0_97 = arith.constant 0 : index
    %109 = vector.load %arg22[%c0_96, %c0_97] : memref<8x128xf32, #tpu.memory_space<vmem>>, vector<8x128xf32>
    tpu.vector_store %arg22[%c0_96, %c0_97], %108 {strides = array<i32>} : memref<8x128xf32, #tpu.memory_space<vmem>>, vector<8x128xf32>,
    return
  }
  func.func @transform_0(%arg0: i32) -> (i32, i32) {
    %c0_i32 = arith.constant 0 : i32
    %c0_i32_0 = arith.constant 0 : i32
    %c0_i32_1 = arith.constant 0 : i32
    return %c0_i32, %c0_i32_0 : i32, i32
  }
  func.func @transform_1(%arg0: i32) -> (i32, i32) {
    %c0_i32 = arith.constant 0 : i32
    %c0_i32_0 = arith.constant 0 : i32
    %c0_i32_1 = arith.constant 0 : i32
    return %c0_i32, %c0_i32_0 : i32, i32
  }
  func.func @transform_2(%arg0: i32) -> (i32, i32, i32) {
    %c0_i32 = arith.constant 0 : i32
    %c0_i32_0 = arith.constant 0 : i32
    %c0_i32_1 = arith.constant 0 : i32
    %c0_i32_2 = arith.constant 0 : i32
    return %c0_i32, %c0_i32_0, %c0_i32_1 : i32, i32, i32
  }
  func.func @transform_3(%arg0: i32) -> (i32, i32, i32) {
    %c0_i32 = arith.constant 0 : i32
    %c0_i32_0 = arith.constant 0 : i32
    %c0_i32_1 = arith.constant 0 : i32
    %c0_i32_2 = arith.constant 0 : i32
    return %c0_i32, %c0_i32_0, %c0_i32_1 : i32, i32, i32
  }
  func.func @transform_4(%arg0: i32) -> (i32, i32) {
    %c0_i32 = arith.constant 0 : i32
    %c0_i32_0 = arith.constant 0 : i32
    %c0_i32_1 = arith.constant 0 : i32
    return %c0_i32, %c0_i32_0 : i32, i32
  }
  func.func @transform_5(%arg0: i32) -> (i32, i32) {
    %c0_i32 = arith.constant 0 : i32
    %c0_i32_0 = arith.constant 0 : i32
    %c0_i32_1 = arith.constant 0 : i32
    return %c0_i32, %c0_i32_0 : i32, i32
  }
  func.func @transform_6(%arg0: i32) -> (i32, i32) {
    %c0_i32 = arith.constant 0 : i32
    %c0_i32_0 = arith.constant 0 : i32
    %c0_i32_1 = arith.constant 0 : i32
    return %c0_i32, %c0_i32_0 : i32, i32
  }
  func.func @transform_7(%arg0: i32) -> (i32, i32, i32) {
    %c0_i32 = arith.constant 0 : i32
    %c0_i32_0 = arith.constant 0 : i32
    %c0_i32_1 = arith.constant 0 : i32
    %c0_i32_2 = arith.constant 0 : i32
    return %c0_i32, %c0_i32_0, %c0_i32_1 : i32, i32, i32
  }
  func.func @transform_8(%arg0: i32) -> (i32, i32) {
    %c0_i32 = arith.constant 0 : i32
    %c0_i32_0 = arith.constant 0 : i32
    %c0_i32_1 = arith.constant 0 : i32
    return %c0_i32, %c0_i32_0 : i32, i32
  }
  func.func @transform_9(%arg0: i32) -> (i32, i32) {
    %c0_i32 = arith.constant 0 : i32
    %c0_i32_0 = arith.constant 0 : i32
    %c0_i32_1 = arith.constant 0 : i32
    return %c0_i32, %c0_i32_0 : i32, i32
  }
  func.func @transform_10(%arg0: i32) -> (i32, i32) {
    %c0_i32 = arith.constant 0 : i32
    %c0_i32_0 = arith.constant 0 : i32
    %c0_i32_1 = arith.constant 0 : i32
    return %c0_i32, %c0_i32_0 : i32, i32
  }
  func.func @transform_11(%arg0: i32) -> (i32, i32, i32) {
    %c0_i32 = arith.constant 0 : i32
    %c0_i32_0 = arith.constant 0 : i32
    %c0_i32_1 = arith.constant 0 : i32
    %c0_i32_2 = arith.constant 0 : i32
    return %c0_i32, %c0_i32_0, %c0_i32_1 : i32, i32, i32
  }
  func.func @transform_12(%arg0: i32) -> (i32, i32, i32) {
    %c0_i32 = arith.constant 0 : i32
    %c0_i32_0 = arith.constant 0 : i32
    %c0_i32_1 = arith.constant 0 : i32
    %c0_i32_2 = arith.constant 0 : i32
    return %c0_i32, %c0_i32_0, %c0_i32_1 : i32, i32, i32
  }
  func.func @transform_13(%arg0: i32) -> (i32, i32) {
    %c0_i32 = arith.constant 0 : i32
    %c0_i32_0 = arith.constant 0 : i32
    %c0_i32_1 = arith.constant 0 : i32
    return %c0_i32, %c0_i32_0 : i32, i32
  }
  func.func @transform_14(%arg0: i32) -> (i32, i32) {
    %c0_i32 = arith.constant 0 : i32
    %c0_i32_0 = arith.constant 0 : i32
    %c0_i32_1 = arith.constant 0 : i32
    return %c0_i32, %c0_i32_0 : i32, i32
  }
  func.func @transform_15(%arg0: i32) -> (i32, i32) {
    %c0_i32 = arith.constant 0 : i32
    %c0_i32_0 = arith.constant 0 : i32
    %c0_i32_1 = arith.constant 0 : i32
    return %c0_i32, %c0_i32_0 : i32, i32
  }
  func.func @transform_16(%arg0: i32) -> (i32, i32) {
    %c0_i32 = arith.constant 0 : i32
    %c0_i32_0 = arith.constant 0 : i32
    %c0_i32_1 = arith.constant 0 : i32
    return %c0_i32, %c0_i32_0 : i32, i32
  }
  func.func @transform_17(%arg0: i32) -> (i32, i32) {
    %c0_i32 = arith.constant 0 : i32
    %c0_i32_0 = arith.constant 0 : i32
    %c0_i32_1 = arith.constant 0 : i32
    return %c0_i32, %c0_i32_0 : i32, i32
  }
  func.func @transform_18(%arg0: i32) -> (i32, i32, i32) {
    %c0_i32 = arith.constant 0 : i32
    %c0_i32_0 = arith.constant 0 : i32
    %c0_i32_1 = arith.constant 0 : i32
    %c0_i32_2 = arith.constant 0 : i32
    return %c0_i32, %c0_i32_0, %c0_i32_1 : i32, i32, i32
  }
  func.func @transform_19(%arg0: i32) -> (i32, i32, i32) {
    %c0_i32 = arith.constant 0 : i32
    %c0_i32_0 = arith.constant 0 : i32
    %c0_i32_1 = arith.constant 0 : i32
    %c0_i32_2 = arith.constant 0 : i32
    return %c0_i32, %c0_i32_0, %c0_i32_1 : i32, i32, i32
  }
  func.func @transform_20(%arg0: i32) -> (i32, i32) {
    %c0_i32 = arith.constant 0 : i32
    %c0_i32_0 = arith.constant 0 : i32
    %c0_i32_1 = arith.constant 0 : i32
    return %c0_i32, %c0_i32_0 : i32, i32
  }
  func.func @transform_21(%arg0: i32) -> (i32, i32) {
    %c0_i32 = arith.constant 0 : i32
    %c0_i32_0 = arith.constant 0 : i32
    %c0_i32_1 = arith.constant 0 : i32
    return %c0_i32, %c0_i32_0 : i32, i32
  }
}

</mosaic_0001>

<llo_original>
// kernel: _fused_gnn_call.1
$region0: #{_fused_gnn_call.1}
  #allocation0 [shape = 'u32[]', space=smem, size = 0x4, offset = 0x4, fixed_abs, tag = 'smem constant byte address 0x4 - core index']
  #allocation1 [shape = 'u32[144,128]{1,0:T(1,128)}', space=vmem, size = 0x12000, scoped, tag = 'internal scratch']
  %s0 = inlined_call_operand.hbm [shape: f32[128,128], index: 0, kind: input, shape index: {}]
  %s1 = inlined_call_operand.hbm [shape: f32[128,128], index: 1, kind: input, shape index: {}]
  %s2 = inlined_call_operand.hbm [shape: f32[2,128,128], index: 2, kind: input, shape index: {}]
  %s3 = inlined_call_operand.vmem [shape: f32[2,1,128], index: 3, kind: input, shape index: {}]
  %s4 = inlined_call_operand.vmem [shape: f32[8,128], index: 4, kind: input, shape index: {}]
  %s5 = inlined_call_operand.vmem [shape: f32[8,128], index: 5, kind: input, shape index: {}]
  %s6 = inlined_call_operand.hbm [shape: f32[8,128], index: 6, kind: input, shape index: {}]
  %s7 = inlined_call_operand.hbm [shape: f32[3,128,128], index: 7, kind: input, shape index: {}]
  %s8 = inlined_call_operand.hbm [shape: f32[1,128], index: 8, kind: input, shape index: {}]
  %s9 = inlined_call_operand.hbm [shape: f32[128,128], index: 9, kind: input, shape index: {}]
  %s10 = inlined_call_operand.vmem [shape: f32[1,128], index: 10, kind: input, shape index: {}]
  %s11 = inlined_call_operand.hbm [shape: f32[2,128,128], index: 11, kind: input, shape index: {}]
  %s12 = inlined_call_operand.vmem [shape: f32[2,1,128], index: 12, kind: input, shape index: {}]
  %s13 = inlined_call_operand.vmem [shape: f32[8,128], index: 13, kind: input, shape index: {}]
  %s14 = inlined_call_operand.hbm [shape: f32[128,128], index: 14, kind: input, shape index: {}]
  %s15 = inlined_call_operand.vmem [shape: f32[1,128], index: 15, kind: input, shape index: {}]
  %s16 = inlined_call_operand.hbm [shape: f32[128,128], index: 16, kind: input, shape index: {}]
  %s17 = inlined_call_operand.vmem [shape: f32[1,128], index: 17, kind: input, shape index: {}]
  %s18 = inlined_call_operand.hbm [shape: f32[2,128,128], index: 18, kind: input, shape index: {}]
  %s19 = inlined_call_operand.vmem [shape: f32[2,1,128], index: 19, kind: input, shape index: {}]
  %s20 = inlined_call_operand.hbm [shape: f32[8,128], index: 20, kind: output, shape index: {0}]
  %s21 = inlined_call_operand.hbm [shape: f32[8,128], index: 21, kind: output, shape index: {1}]
  %22 = xla_tuple %s20, %s21
  %s23 = sld [smem:[#allocation0]]
  $region142: #{_fused_gnn_call.1} parent=0
    _
  %s25 = ssub.s32 1, %s23
  %s26 = scalar_select 0, %s25, %s23
  $region1: #{_fused_gnn_call.1} parent=0
    #allocation2 [shape = 'u8[65536]{0}', space=vmem, size = 0x10000, scoped, tag = 'input window, operand 0, single buffered']
    #allocation3 [shape = 's32[1]{0}', space=sflag, size = 0x4, scoped, tag = 'scoped memory for _fused_gnn_call.1']
    #allocation4 [shape = 's32[1]{0}', space=sflag, size = 0x4, scoped, tag = 'scoped memory for _fused_gnn_call.1']
    #allocation5 [shape = 'u8[65536]{0}', space=vmem, size = 0x10000, scoped, tag = 'input window, operand 1, single buffered']
    #allocation6 [shape = 's32[1]{0}', space=sflag, size = 0x4, scoped, tag = 'scoped memory for _fused_gnn_call.1']
    #allocation7 [shape = 'u8[131072]{0}', space=vmem, size = 0x20000, scoped, tag = 'input window, operand 2, single buffered']
    #allocation8 [shape = 'u8[4096]{0}', space=vmem, size = 0x1000, scoped, tag = 'input window, operand 6, single buffered']
    #allocation9 [shape = 's32[1]{0}', space=sflag, size = 0x4, scoped, tag = 'scoped memory for _fused_gnn_call.1']
    #allocation10 [shape = 'u8[196608]{0}', space=vmem, size = 0x30000, scoped, tag = 'input window, operand 7, single buffered']
    #allocation11 [shape = 'u8[512]{0}', space=vmem, size = 0x400, scoped, tag = 'input window, operand 8, single buffered']
    #allocation12 [shape = 's32[1]{0}', space=sflag, size = 0x4, scoped, tag = 'scoped memory for _fused_gnn_call.1']
    #allocation13 [shape = 'u8[65536]{0}', space=vmem, size = 0x10000, scoped, tag = 'input window, operand 9, single buffered']
    #allocation14 [shape = 'u8[131072]{0}', space=vmem, size = 0x20000, scoped, tag = 'input window, operand 11, single buffered']
    #allocation15 [shape = 's32[1]{0}', space=sflag, size = 0x4, scoped, tag = 'scoped memory for _fused_gnn_call.1']
    #allocation16 [shape = 'u8[65536]{0}', space=vmem, size = 0x10000, scoped, tag = 'input window, operand 14, single buffered']
    #allocation17 [shape = 'u8[65536]{0}', space=vmem, size = 0x10000, scoped, tag = 'input window, operand 16, single buffered']
    #allocation18 [shape = 's32[1]{0}', space=sflag, size = 0x4, scoped, tag = 'scoped memory for _fused_gnn_call.1']
    #allocation19 [shape = 'u8[131072]{0}', space=vmem, size = 0x20000, scoped, tag = 'input window, operand 18, single buffered']
    #allocation20 [shape = 'u8[4096]{0}', space=vmem, size = 0x1000, scoped, tag = 'output window, operand 0, single buffered']
    #allocation21 [shape = 'u8[4096]{0}', space=vmem, size = 0x1000, scoped, tag = 'output window, operand 1, single buffered']
    #allocation22 [shape = 's32[1]{0}', space=sflag, size = 0x4, scoped, tag = 'scoped memory for _fused_gnn_call.1']
    %27 = vsyncpa [#allocation3], 0
    %28 = vsyncpa [#allocation6], 0
    %29 = vsyncpa [#allocation9], 0
    %30 = vsyncpa [#allocation12], 0
    %31 = vsyncpa [#allocation15], 0
    %32 = vsyncpa [#allocation18], 0
    %33 = vsyncpa [#allocation4], 0
    %34 = vsyncpa [#allocation22], 0
    // Predicated region
    $region2: #{_fused_gnn_call.1} parent=1 // pred_check
      _
    $region3: #{_fused_gnn_call.1} parent=1 // pred_check_branch
      %36 = sbr.rel (0) target = $region5
    $region4: #{_fused_gnn_call.1} parent=1 // pred_region
      %s38 = ssub.s32 2048, 2048
      %39 = vsyncadd [#allocation3], %s38
      %s40 = sshll.u32 [#allocation2], 4
      %s41 = int_to_ptr.vmem [resolvable:$true] %s40
      %46 = dma.hbm_to_vmem [thread:$0]  %s0, 2048, %s41, [#allocation3], 128, 128, 8
    $region5: #{_fused_gnn_call.1} parent=1 // pred_fallthru
      _
    // Predicated region
    $region6: #{_fused_gnn_call.1} parent=1 // pred_check
      _
    $region7: #{_fused_gnn_call.1} parent=1 // pred_check_branch
      %48 = sbr.rel (0) target = $region9
    $region8: #{_fused_gnn_call.1} parent=1 // pred_region
      %s50 = ssub.s32 2048, 2048
      %51 = vsyncadd [#allocation6], %s50
      %s52 = sshll.u32 [#allocation5], 4
      %s53 = int_to_ptr.vmem [resolvable:$true] %s52
      %58 = dma.hbm_to_vmem [thread:$0]  %s1, 2048, %s53, [#allocation6], 128, 128, 8
    $region9: #{_fused_gnn_call.1} parent=1 // pred_fallthru
      _
    // Predicated region
    $region10: #{_fused_gnn_call.1} parent=1 // pred_check
      _
    $region11: #{_fused_gnn_call.1} parent=1 // pred_check_branch
      %60 = sbr.rel (0) target = $region13
    $region12: #{_fused_gnn_call.1} parent=1 // pred_region
      %s62 = ssub.s32 4096, 4096
      %63 = vsyncadd [#allocation6], %s62
      %s64 = sshll.u32 [#allocation7], 4
      %s65 = int_to_ptr.vmem [resolvable:$true] %s64
      %70 = dma.hbm_to_vmem [thread:$0]  %s2, 4096, %s65, [#allocation6], 128, 128, 8
    $region13: #{_fused_gnn_call.1} parent=1 // pred_fallthru
      _
    // Predicated region
    $region14: #{_fused_gnn_call.1} parent=1 // pred_check
      _
    $region15: #{_fused_gnn_call.1} parent=1 // pred_check_branch
      %72 = sbr.rel (0) target = $region17
    $region16: #{_fused_gnn_call.1} parent=1 // pred_region
      _
    $region17: #{_fused_gnn_call.1} parent=1 // pred_fallthru
      _
    // Predicated region
    $region18: #{_fused_gnn_call.1} parent=1 // pred_check
      _
    $region19: #{_fused_gnn_call.1} parent=1 // pred_check_branch
      %74 = sbr.rel (0) target = $region21
    $region20: #{_fused_gnn_call.1} parent=1 // pred_region
      _
    $region21: #{_fused_gnn_call.1} parent=1 // pred_fallthru
      _
    // Predicated region
    $region22: #{_fused_gnn_call.1} parent=1 // pred_check
      _
    $region23: #{_fused_gnn_call.1} parent=1 // pred_check_branch
      %76 = sbr.rel (0) target = $region25
    $region24: #{_fused_gnn_call.1} parent=1 // pred_region
      _
    $region25: #{_fused_gnn_call.1} parent=1 // pred_fallthru
      _
    // Predicated region
    $region26: #{_fused_gnn_call.1} parent=1 // pred_check
      _
    $region27: #{_fused_gnn_call.1} parent=1 // pred_check_branch
      %78 = sbr.rel (0) target = $region29
    $region28: #{_fused_gnn_call.1} parent=1 // pred_region
      %s80 = ssub.s32 128, 128
      %81 = vsyncadd [#allocation9], %s80
      %s83 = sshll.u32 [#allocation8], 4
      %s84 = int_to_ptr.vmem [resolvable:$true] %s83
      %86 = dma.hbm_to_vmem [thread:$0]  %s6, 128, %s84, [#allocation9]
    $region29: #{_fused_gnn_call.1} parent=1 // pred_fallthru
      _
    // Predicated region
    $region30: #{_fused_gnn_call.1} parent=1 // pred_check
      _
    $region31: #{_fused_gnn_call.1} parent=1 // pred_check_branch
      %88 = sbr.rel (0) target = $region33
    $region32: #{_fused_gnn_call.1} parent=1 // pred_region
      %s90 = ssub.s32 6144, 6144
      %91 = vsyncadd [#allocation9], %s90
      %s92 = sshll.u32 [#allocation10], 4
      %s93 = int_to_ptr.vmem [resolvable:$true] %s92
      %98 = dma.hbm_to_vmem [thread:$0]  %s7, 6144, %s93, [#allocation9], 128, 128, 8
    $region33: #{_fused_gnn_call.1} parent=1 // pred_fallthru
      _
    // Predicated region
    $region34: #{_fused_gnn_call.1} parent=1 // pred_check
      _
    $region35: #{_fused_gnn_call.1} parent=1 // pred_check_branch
      %100 = sbr.rel (0) target = $region37
    $region36: #{_fused_gnn_call.1} parent=1 // pred_region
      %s102 = ssub.s32 16, 16
      %103 = vsyncadd [#allocation12], %s102
      %s105 = sshll.u32 [#allocation11], 4
      %s106 = int_to_ptr.vmem [resolvable:$true] %s105
      %108 = dma.hbm_to_vmem [thread:$0]  %s8, 16, %s106, [#allocation12]
    $region37: #{_fused_gnn_call.1} parent=1 // pred_fallthru
      _
    // Predicated region
    $region38: #{_fused_gnn_call.1} parent=1 // pred_check
      _
    $region39: #{_fused_gnn_call.1} parent=1 // pred_check_branch
      %110 = sbr.rel (0) target = $region41
    $region40: #{_fused_gnn_call.1} parent=1 // pred_region
      %s112 = ssub.s32 2048, 2048
      %113 = vsyncadd [#allocation12], %s112
      %s114 = sshll.u32 [#allocation13], 4
      %s115 = int_to_ptr.vmem [resolvable:$true] %s114
      %120 = dma.hbm_to_vmem [thread:$0]  %s9, 2048, %s115, [#allocation12], 128, 128, 8
    $region41: #{_fused_gnn_call.1} parent=1 // pred_fallthru
      _
    // Predicated region
    $region42: #{_fused_gnn_call.1} parent=1 // pred_check
      _
    $region43: #{_fused_gnn_call.1} parent=1 // pred_check_branch
      %122 = sbr.rel (0) target = $region45
    $region44: #{_fused_gnn_call.1} parent=1 // pred_region
      _
    $region45: #{_fused_gnn_call.1} parent=1 // pred_fallthru
      _
    // Predicated region
    $region46: #{_fused_gnn_call.1} parent=1 // pred_check
      _
    $region47: #{_fused_gnn_call.1} parent=1 // pred_check_branch
      %124 = sbr.rel (0) target = $region49
    $region48: #{_fused_gnn_call.1} parent=1 // pred_region
      %s126 = ssub.s32 4096, 4096
      %127 = vsyncadd [#allocation15], %s126
      %s128 = sshll.u32 [#allocation14], 4
      %s129 = int_to_ptr.vmem [resolvable:$true] %s128
      %134 = dma.hbm_to_vmem [thread:$0]  %s11, 4096, %s129, [#allocation15], 128, 128, 8
    $region49: #{_fused_gnn_call.1} parent=1 // pred_fallthru
      _
    // Predicated region
    $region50: #{_fused_gnn_call.1} parent=1 // pred_check
      _
    $region51: #{_fused_gnn_call.1} parent=1 // pred_check_branch
      %136 = sbr.rel (0) target = $region53
    $region52: #{_fused_gnn_call.1} parent=1 // pred_region
      _
    $region53: #{_fused_gnn_call.1} parent=1 // pred_fallthru
      _
    // Predicated region
    $region54: #{_fused_gnn_call.1} parent=1 // pred_check
      _
    $region55: #{_fused_gnn_call.1} parent=1 // pred_check_branch
      %138 = sbr.rel (0) target = $region57
    $region56: #{_fused_gnn_call.1} parent=1 // pred_region
      _
    $region57: #{_fused_gnn_call.1} parent=1 // pred_fallthru
      _
    // Predicated region
    $region58: #{_fused_gnn_call.1} parent=1 // pred_check
      _
    $region59: #{_fused_gnn_call.1} parent=1 // pred_check_branch
      %140 = sbr.rel (0) target = $region61
    $region60: #{_fused_gnn_call.1} parent=1 // pred_region
      %s142 = ssub.s32 2048, 2048
      %143 = vsyncadd [#allocation15], %s142
      %s144 = sshll.u32 [#allocation16], 4
      %s145 = int_to_ptr.vmem [resolvable:$true] %s144
      %150 = dma.hbm_to_vmem [thread:$0]  %s14, 2048, %s145, [#allocation15], 128, 128, 8
    $region61: #{_fused_gnn_call.1} parent=1 // pred_fallthru
      _
    // Predicated region
    $region62: #{_fused_gnn_call.1} parent=1 // pred_check
      _
    $region63: #{_fused_gnn_call.1} parent=1 // pred_check_branch
      %152 = sbr.rel (0) target = $region65
    $region64: #{_fused_gnn_call.1} parent=1 // pred_region
      _
    $region65: #{_fused_gnn_call.1} parent=1 // pred_fallthru
      _
    // Predicated region
    $region66: #{_fused_gnn_call.1} parent=1 // pred_check
      _
    $region67: #{_fused_gnn_call.1} parent=1 // pred_check_branch
      %154 = sbr.rel (0) target = $region69
    $region68: #{_fused_gnn_call.1} parent=1 // pred_region
      %s156 = ssub.s32 2048, 2048
      %157 = vsyncadd [#allocation18], %s156
      %s158 = sshll.u32 [#allocation17], 4
      %s159 = int_to_ptr.vmem [resolvable:$true] %s158
      %164 = dma.hbm_to_vmem [thread:$0]  %s16, 2048, %s159, [#allocation18], 128, 128, 8
    $region69: #{_fused_gnn_call.1} parent=1 // pred_fallthru
      _
    // Predicated region
    $region70: #{_fused_gnn_call.1} parent=1 // pred_check
      _
    $region71: #{_fused_gnn_call.1} parent=1 // pred_check_branch
      %166 = sbr.rel (0) target = $region73
    $region72: #{_fused_gnn_call.1} parent=1 // pred_region
      _
    $region73: #{_fused_gnn_call.1} parent=1 // pred_fallthru
      _
    // Predicated region
    $region74: #{_fused_gnn_call.1} parent=1 // pred_check
      _
    $region75: #{_fused_gnn_call.1} parent=1 // pred_check_branch
      %168 = sbr.rel (0) target = $region77
    $region76: #{_fused_gnn_call.1} parent=1 // pred_region
      %s170 = ssub.s32 4096, 4096
      %171 = vsyncadd [#allocation18], %s170
      %s172 = sshll.u32 [#allocation19], 4
      %s173 = int_to_ptr.vmem [resolvable:$true] %s172
      %178 = dma.hbm_to_vmem [thread:$0]  %s18, 4096, %s173, [#allocation18], 128, 128, 8
    $region77: #{_fused_gnn_call.1} parent=1 // pred_fallthru
      _
    // Predicated region
    $region78: #{_fused_gnn_call.1} parent=1 // pred_check
      _
    $region79: #{_fused_gnn_call.1} parent=1 // pred_check_branch
      %180 = sbr.rel (0) target = $region81
    $region80: #{_fused_gnn_call.1} parent=1 // pred_region
      _
    $region81: #{_fused_gnn_call.1} parent=1 // pred_fallthru
      _
    // Predicated region
    $region82: #{_fused_gnn_call.1} parent=1 // pred_check
      _
    $region83: #{_fused_gnn_call.1} parent=1 // pred_check_branch
      %182 = sbr.rel (0) target = $region85
    $region84: #{_fused_gnn_call.1} parent=1 // pred_region
      %183 = dma.done [#allocation3], 2048
    $region85: #{_fused_gnn_call.1} parent=1 // pred_fallthru
      _
    // Predicated region
    $region86: #{_fused_gnn_call.1} parent=1 // pred_check
      _
    $region87: #{_fused_gnn_call.1} parent=1 // pred_check_branch
      %185 = sbr.rel (0) target = $region89
    $region88: #{_fused_gnn_call.1} parent=1 // pred_region
      %186 = dma.done [#allocation6], 2048
    $region89: #{_fused_gnn_call.1} parent=1 // pred_fallthru
      _
    // Predicated region
    $region90: #{_fused_gnn_call.1} parent=1 // pred_check
      _
    $region91: #{_fused_gnn_call.1} parent=1 // pred_check_branch
      %188 = sbr.rel (0) target = $region93
    $region92: #{_fused_gnn_call.1} parent=1 // pred_region
      %189 = dma.done [#allocation6], 4096
    $region93: #{_fused_gnn_call.1} parent=1 // pred_fallthru
      _
    // Predicated region
    $region94: #{_fused_gnn_call.1} parent=1 // pred_check
      _
    $region95: #{_fused_gnn_call.1} parent=1 // pred_check_branch
      %191 = sbr.rel (0) target = $region97
    $region96: #{_fused_gnn_call.1} parent=1 // pred_region
      %192 = dma.done [#allocation9], 128
    $region97: #{_fused_gnn_call.1} parent=1 // pred_fallthru
      _
    // Predicated region
    $region98: #{_fused_gnn_call.1} parent=1 // pred_check
      _
    $region99: #{_fused_gnn_call.1} parent=1 // pred_check_branch
      %194 = sbr.rel (0) target = $region101
    $region100: #{_fused_gnn_call.1} parent=1 // pred_region
      %195 = dma.done [#allocation9], 6144
    $region101: #{_fused_gnn_call.1} parent=1 // pred_fallthru
      _
    // Predicated region
    $region102: #{_fused_gnn_call.1} parent=1 // pred_check
      _
    $region103: #{_fused_gnn_call.1} parent=1 // pred_check_branch
      %197 = sbr.rel (0) target = $region105
    $region104: #{_fused_gnn_call.1} parent=1 // pred_region
      %198 = dma.done [#allocation12], 16
    $region105: #{_fused_gnn_call.1} parent=1 // pred_fallthru
      _
    // Predicated region
    $region106: #{_fused_gnn_call.1} parent=1 // pred_check
      _
    $region107: #{_fused_gnn_call.1} parent=1 // pred_check_branch
      %200 = sbr.rel (0) target = $region109
    $region108: #{_fused_gnn_call.1} parent=1 // pred_region
      %201 = dma.done [#allocation12], 2048
    $region109: #{_fused_gnn_call.1} parent=1 // pred_fallthru
      _
    // Predicated region
    $region110: #{_fused_gnn_call.1} parent=1 // pred_check
      _
    $region111: #{_fused_gnn_call.1} parent=1 // pred_check_branch
      %203 = sbr.rel (0) target = $region113
    $region112: #{_fused_gnn_call.1} parent=1 // pred_region
      %204 = dma.done [#allocation15], 4096
    $region113: #{_fused_gnn_call.1} parent=1 // pred_fallthru
      _
    // Predicated region
    $region114: #{_fused_gnn_call.1} parent=1 // pred_check
      _
    $region115: #{_fused_gnn_call.1} parent=1 // pred_check_branch
      %206 = sbr.rel (0) target = $region117
    $region116: #{_fused_gnn_call.1} parent=1 // pred_region
      %207 = dma.done [#allocation15], 2048
    $region117: #{_fused_gnn_call.1} parent=1 // pred_fallthru
      _
    // Predicated region
    $region118: #{_fused_gnn_call.1} parent=1 // pred_check
      _
    $region119: #{_fused_gnn_call.1} parent=1 // pred_check_branch
      %209 = sbr.rel (0) target = $region121
    $region120: #{_fused_gnn_call.1} parent=1 // pred_region
      %210 = dma.done [#allocation18], 2048
    $region121: #{_fused_gnn_call.1} parent=1 // pred_fallthru
      _
    // Predicated region
    $region122: #{_fused_gnn_call.1} parent=1 // pred_check
      _
    $region123: #{_fused_gnn_call.1} parent=1 // pred_check_branch
      %212 = sbr.rel (0) target = $region125
    $region124: #{_fused_gnn_call.1} parent=1 // pred_region
      %213 = dma.done [#allocation18], 4096
    $region125: #{_fused_gnn_call.1} parent=1 // pred_fallthru
      _
    %v214 = vld [vmem:[#allocation2] sm:$0xff]
    %v215 = vld [vmem:[#allocation2 + $0x8] sm:$0xff]
    %v216 = vld [vmem:[#allocation2 + $0x10] sm:$0xff]
    %v217 = vld [vmem:[#allocation2 + $0x18] sm:$0xff]
    %v218 = vld [vmem:[#allocation2 + $0x20] sm:$0xff]
    %v219 = vld [vmem:[#allocation2 + $0x28] sm:$0xff]
    %v220 = vld [vmem:[#allocation2 + $0x30] sm:$0xff]
    %v221 = vld [vmem:[#allocation2 + $0x38] sm:$0xff]
    %v222 = vld [vmem:[#allocation2 + $0x40] sm:$0xff]
    %v223 = vld [vmem:[#allocation2 + $0x48] sm:$0xff]
    %v224 = vld [vmem:[#allocation2 + $0x50] sm:$0xff]
    %v225 = vld [vmem:[#allocation2 + $0x58] sm:$0xff]
    %v226 = vld [vmem:[#allocation2 + $0x60] sm:$0xff]
    %v227 = vld [vmem:[#allocation2 + $0x68] sm:$0xff]
    %v228 = vld [vmem:[#allocation2 + $0x70] sm:$0xff]
    %v229 = vld [vmem:[#allocation2 + $0x78] sm:$0xff]
    %v230 = vld [vmem:[#allocation5] sm:$0xff]
    %v231 = vld [vmem:[#allocation5 + $0x8] sm:$0xff]
    %v232 = vld [vmem:[#allocation5 + $0x10] sm:$0xff]
    %v233 = vld [vmem:[#allocation5 + $0x18] sm:$0xff]
    %v234 = vld [vmem:[#allocation5 + $0x20] sm:$0xff]
    %v235 = vld [vmem:[#allocation5 + $0x28] sm:$0xff]
    %v236 = vld [vmem:[#allocation5 + $0x30] sm:$0xff]
    %v237 = vld [vmem:[#allocation5 + $0x38] sm:$0xff]
    %v238 = vld [vmem:[#allocation5 + $0x40] sm:$0xff]
    %v239 = vld [vmem:[#allocation5 + $0x48] sm:$0xff]
    %v240 = vld [vmem:[#allocation5 + $0x50] sm:$0xff]
    %v241 = vld [vmem:[#allocation5 + $0x58] sm:$0xff]
    %v242 = vld [vmem:[#allocation5 + $0x60] sm:$0xff]
    %v243 = vld [vmem:[#allocation5 + $0x68] sm:$0xff]
    %v244 = vld [vmem:[#allocation5 + $0x70] sm:$0xff]
    %v245 = vld [vmem:[#allocation5 + $0x78] sm:$0xff]
    %v246 = vld [vmem:[#allocation7] sm:$0xff]
    %v247 = vld [vmem:[#allocation7 + $0x8] sm:$0xff]
    %v248 = vld [vmem:[#allocation7 + $0x10] sm:$0xff]
    %v249 = vld [vmem:[#allocation7 + $0x18] sm:$0xff]
    %v250 = vld [vmem:[#allocation7 + $0x20] sm:$0xff]
    %v251 = vld [vmem:[#allocation7 + $0x28] sm:$0xff]
    %v252 = vld [vmem:[#allocation7 + $0x30] sm:$0xff]
    %v253 = vld [vmem:[#allocation7 + $0x38] sm:$0xff]
    %v254 = vld [vmem:[#allocation7 + $0x40] sm:$0xff]
    %v255 = vld [vmem:[#allocation7 + $0x48] sm:$0xff]
    %v256 = vld [vmem:[#allocation7 + $0x50] sm:$0xff]
    %v257 = vld [vmem:[#allocation7 + $0x58] sm:$0xff]
    %v258 = vld [vmem:[#allocation7 + $0x60] sm:$0xff]
    %v259 = vld [vmem:[#allocation7 + $0x68] sm:$0xff]
    %v260 = vld [vmem:[#allocation7 + $0x70] sm:$0xff]
    %v261 = vld [vmem:[#allocation7 + $0x78] sm:$0xff]
    %262 = vmatprep.subr.mxu0 0.0
    %263 = vmatpush1.msra.mxu0 %v246
    %264 = vmatprep.subr.mxu0 0.0
    %265 = vmatpush1.msra.mxu0 %v247
    %266 = vmatprep.subr.mxu0 0.0
    %267 = vmatpush1.msra.mxu0 %v248
    %268 = vmatprep.subr.mxu0 0.0
    %269 = vmatpush1.msra.mxu0 %v249
    %270 = vmatprep.subr.mxu0 0.0
    %271 = vmatpush1.msra.mxu0 %v250
    %272 = vmatprep.subr.mxu0 0.0
    %273 = vmatpush1.msra.mxu0 %v251
    %274 = vmatprep.subr.mxu0 0.0
    %275 = vmatpush1.msra.mxu0 %v252
    %276 = vmatprep.subr.mxu0 0.0
    %277 = vmatpush1.msra.mxu0 %v253
    %278 = vmatprep.subr.mxu0 0.0
    %279 = vmatpush1.msra.mxu0 %v254
    %280 = vmatprep.subr.mxu0 0.0
    %281 = vmatpush1.msra.mxu0 %v255
    %282 = vmatprep.subr.mxu0 0.0
    %283 = vmatpush1.msra.mxu0 %v256
    %284 = vmatprep.subr.mxu0 0.0
    %285 = vmatpush1.msra.mxu0 %v257
    %286 = vmatprep.subr.mxu0 0.0
    %287 = vmatpush1.msra.mxu0 %v258
    %288 = vmatprep.subr.mxu0 0.0
    %289 = vmatpush1.msra.mxu0 %v259
    %290 = vmatprep.subr.mxu0 0.0
    %291 = vmatpush1.msra.mxu0 %v260
    %292 = vmatprep.subr.mxu0 0.0
    %293 = vmatpush1.msra.mxu0 %v261
    %294 = vmatprep.subr.mxu0 0.0
    %295 = vmatpush1.msra.mxu0 0.0
    %296 = vmatprep.subr.mxu0 0.0
    %297 = vmatpush1.msra.mxu0 0.0
    %298 = vmatprep.subr.mxu0 0.0
    %299 = vmatpush1.msra.mxu0 0.0
    %300 = vmatprep.subr.mxu0 0.0
    %301 = vmatpush1.msra.mxu0 0.0
    %302 = vmatprep.subr.mxu0 0.0
    %303 = vmatpush1.msra.mxu0 0.0
    %304 = vmatprep.subr.mxu0 0.0
    %305 = vmatpush1.msra.mxu0 0.0
    %306 = vmatprep.subr.mxu0 0.0
    %307 = vmatpush1.msra.mxu0 0.0
    %308 = vmatprep.subr.mxu0 0.0
    %309 = vmatpush1.msra.mxu0 0.0
    %310 = vmatprep.subr.mxu0 0.0
    %311 = vmatpush1.msra.mxu0 0.0
    %312 = vmatprep.subr.mxu0 0.0
    %313 = vmatpush1.msra.mxu0 0.0
    %314 = vmatprep.subr.mxu0 0.0
    %315 = vmatpush1.msra.mxu0 0.0
    %316 = vmatprep.subr.mxu0 0.0
    %317 = vmatpush1.msra.mxu0 0.0
    %318 = vmatprep.subr.mxu0 0.0
    %319 = vmatpush1.msra.mxu0 0.0
    %320 = vmatprep.subr.mxu0 0.0
    %321 = vmatpush1.msra.mxu0 0.0
    %322 = vmatprep.subr.mxu0 0.0
    %323 = vmatpush1.msra.mxu0 0.0
    %324 = vmatprep.subr.mxu0 0.0
    %325 = vmatpush1.msra.mxu0 0.0
    %326 = vmatprep.mubr.f32.mxu0 0.0
    %327 = vmatmul.mubr.f32.gmra.mrb[0].mxu0 %v230
    %v328 = vpop.f32.mrb[0].mxu0
    %v329 = vadd.f32 0.0, %v328
    %v330 = vpop.f32.mrb[0].mxu0
    %331 = vmatprep.mubr.f32.mxu0 0.0
    %332 = vmatmul.mubr.f32.gmra.mrb[0].mxu0 %v231
    %v333 = vpop.f32.mrb[0].mxu0
    %v334 = vadd.f32 0.0, %v333
    %v335 = vpop.f32.mrb[0].mxu0
    %336 = vmatprep.mubr.f32.mxu0 0.0
    %337 = vmatmul.mubr.f32.gmra.mrb[0].mxu0 %v232
    %v338 = vpop.f32.mrb[0].mxu0
    %v339 = vadd.f32 0.0, %v338
    %v340 = vpop.f32.mrb[0].mxu0
    %341 = vmatprep.mubr.f32.mxu0 0.0
    %342 = vmatmul.mubr.f32.gmra.mrb[0].mxu0 %v233
    %v343 = vpop.f32.mrb[0].mxu0
    %v344 = vadd.f32 0.0, %v343
    %v345 = vpop.f32.mrb[0].mxu0
    %346 = vmatprep.mubr.f32.mxu0 0.0
    %347 = vmatmul.mubr.f32.gmra.mrb[0].mxu0 %v234
    %v348 = vpop.f32.mrb[0].mxu0
    %v349 = vadd.f32 0.0, %v348
    %v350 = vpop.f32.mrb[0].mxu0
    %351 = vmatprep.mubr.f32.mxu0 0.0
    %352 = vmatmul.mubr.f32.gmra.mrb[0].mxu0 %v235
    %v353 = vpop.f32.mrb[0].mxu0
    %v354 = vadd.f32 0.0, %v353
    %v355 = vpop.f32.mrb[0].mxu0
    %356 = vmatprep.mubr.f32.mxu0 0.0
    %357 = vmatmul.mubr.f32.gmra.mrb[0].mxu0 %v236
    %v358 = vpop.f32.mrb[0].mxu0
    %v359 = vadd.f32 0.0, %v358
    %v360 = vpop.f32.mrb[0].mxu0
    %361 = vmatprep.mubr.f32.mxu0 0.0
    %362 = vmatmul.mubr.f32.gmra.mrb[0].mxu0 %v237
    %v363 = vpop.f32.mrb[0].mxu0
    %v364 = vadd.f32 0.0, %v363
    %v365 = vpop.f32.mrb[0].mxu0
    %366 = vmatprep.mubr.f32.mxu0 0.0
    %367 = vmatmul.mubr.f32.gmra.mrb[0].mxu0 %v238
    %v368 = vpop.f32.mrb[0].mxu0
    %v369 = vadd.f32 0.0, %v368
    %v370 = vpop.f32.mrb[0].mxu0
    %371 = vmatprep.mubr.f32.mxu0 0.0
    %372 = vmatmul.mubr.f32.gmra.mrb[0].mxu0 %v239
    %v373 = vpop.f32.mrb[0].mxu0
    %v374 = vadd.f32 0.0, %v373
    %v375 = vpop.f32.mrb[0].mxu0
    %376 = vmatprep.mubr.f32.mxu0 0.0
    %377 = vmatmul.mubr.f32.gmra.mrb[0].mxu0 %v240
    %v378 = vpop.f32.mrb[0].mxu0
    %v379 = vadd.f32 0.0, %v378
    %v380 = vpop.f32.mrb[0].mxu0
    %381 = vmatprep.mubr.f32.mxu0 0.0
    %382 = vmatmul.mubr.f32.gmra.mrb[0].mxu0 %v241
    %v383 = vpop.f32.mrb[0].mxu0
    %v384 = vadd.f32 0.0, %v383
    %v385 = vpop.f32.mrb[0].mxu0
    %386 = vmatprep.mubr.f32.mxu0 0.0
    %387 = vmatmul.mubr.f32.gmra.mrb[0].mxu0 %v242
    %v388 = vpop.f32.mrb[0].mxu0
    %v389 = vadd.f32 0.0, %v388
    %v390 = vpop.f32.mrb[0].mxu0
    %391 = vmatprep.mubr.f32.mxu0 0.0
    %392 = vmatmul.mubr.f32.gmra.mrb[0].mxu0 %v243
    %v393 = vpop.f32.mrb[0].mxu0
    %v394 = vadd.f32 0.0, %v393
    %v395 = vpop.f32.mrb[0].mxu0
    %396 = vmatprep.mubr.f32.mxu0 0.0
    %397 = vmatmul.mubr.f32.gmra.mrb[0].mxu0 %v244
    %v398 = vpop.f32.mrb[0].mxu0
    %v399 = vadd.f32 0.0, %v398
    %v400 = vpop.f32.mrb[0].mxu0
    %401 = vmatprep.mubr.f32.mxu0 0.0
    %402 = vmatmul.mubr.f32.gmra.mrb[0].mxu0 %v245
    %v403 = vpop.f32.mrb[0].mxu0
    %v404 = vadd.f32 0.0, %v403
    %v405 = vpop.f32.mrb[0].mxu0
    %406 = vdwg.mxu0
    %v407 = vld [vmem:[%s3] sm:$0x1]
    %v409 = vlaneseq
    %v410 = vshrl.u32 %v409, 7
    %v411 = vsub.s32 0, %v410
    %v412 = vrot.slane %v407, %v411
    %414 = vmatprep.subr.mxu0 0.0
    %415 = vmatpush1.msra.mxu0 %v329
    %416 = vmatprep.subr.mxu0 0.0
    %417 = vmatpush1.msra.mxu0 %v334
    %418 = vmatprep.subr.mxu0 0.0
    %419 = vmatpush1.msra.mxu0 %v339
    %420 = vmatprep.subr.mxu0 0.0
    %421 = vmatpush1.msra.mxu0 %v344
    %422 = vmatprep.subr.mxu0 0.0
    %423 = vmatpush1.msra.mxu0 %v349
    %424 = vmatprep.subr.mxu0 0.0
    %425 = vmatpush1.msra.mxu0 %v354
    %426 = vmatprep.subr.mxu0 0.0
    %427 = vmatpush1.msra.mxu0 %v359
    %428 = vmatprep.subr.mxu0 0.0
    %429 = vmatpush1.msra.mxu0 %v364
    %430 = vmatprep.subr.mxu0 0.0
    %431 = vmatpush1.msra.mxu0 %v369
    %432 = vmatprep.subr.mxu0 0.0
    %433 = vmatpush1.msra.mxu0 %v374
    %434 = vmatprep.subr.mxu0 0.0
    %435 = vmatpush1.msra.mxu0 %v379
    %436 = vmatprep.subr.mxu0 0.0
    %437 = vmatpush1.msra.mxu0 %v384
    %438 = vmatprep.subr.mxu0 0.0
    %439 = vmatpush1.msra.mxu0 %v389
    %440 = vmatprep.subr.mxu0 0.0
    %441 = vmatpush1.msra.mxu0 %v394
    %442 = vmatprep.subr.mxu0 0.0
    %443 = vmatpush1.msra.mxu0 %v399
    %444 = vmatprep.subr.mxu0 0.0
    %445 = vmatpush1.msra.mxu0 %v404
    %446 = vmatprep.subr.mxu0 0.0
    %447 = vmatpush1.msra.mxu0 0.0
    %448 = vmatprep.subr.mxu0 0.0
    %449 = vmatpush1.msra.mxu0 0.0
    %450 = vmatprep.subr.mxu0 0.0
    %451 = vmatpush1.msra.mxu0 0.0
    %452 = vmatprep.subr.mxu0 0.0
    %453 = vmatpush1.msra.mxu0 0.0
    %454 = vmatprep.subr.mxu0 0.0
    %455 = vmatpush1.msra.mxu0 0.0
    %456 = vmatprep.subr.mxu0 0.0
    %457 = vmatpush1.msra.mxu0 0.0
    %458 = vmatprep.subr.mxu0 0.0
    %459 = vmatpush1.msra.mxu0 0.0
    %460 = vmatprep.subr.mxu0 0.0
    %461 = vmatpush1.msra.mxu0 0.0
    %462 = vmatprep.subr.mxu0 0.0
    %463 = vmatpush1.msra.mxu0 0.0
    %464 = vmatprep.subr.mxu0 0.0
    %465 = vmatpush1.msra.mxu0 0.0
    %466 = vmatprep.subr.mxu0 0.0
    %467 = vmatpush1.msra.mxu0 0.0
    %468 = vmatprep.subr.mxu0 0.0
    %469 = vmatpush1.msra.mxu0 0.0
    %470 = vmatprep.subr.mxu0 0.0
    %471 = vmatpush1.msra.mxu0 0.0
    %472 = vmatprep.subr.mxu0 0.0
    %473 = vmatpush1.msra.mxu0 0.0
    %474 = vmatprep.subr.mxu0 0.0
    %475 = vmatpush1.msra.mxu0 0.0
    %476 = vmatprep.subr.mxu0 0.0
    %477 = vmatpush1.msra.mxu0 0.0
    %478 = vmatprep.mubr.f32.mxu0 0.0
    %479 = vmatmul.mubr.f32.gmra.mrb[0].mxu0 %v214
    %v480 = vpop.f32.mrb[0].mxu0
    %v481 = vadd.f32 %v412, %v480
    %v482 = vpop.f32.mrb[0].mxu0
    %483 = vmatprep.mubr.f32.mxu0 0.0
    %484 = vmatmul.mubr.f32.gmra.mrb[0].mxu0 %v215
    %v485 = vpop.f32.mrb[0].mxu0
    %v486 = vadd.f32 %v412, %v485
    %v487 = vpop.f32.mrb[0].mxu0
    %488 = vmatprep.mubr.f32.mxu0 0.0
    %489 = vmatmul.mubr.f32.gmra.mrb[0].mxu0 %v216
    %v490 = vpop.f32.mrb[0].mxu0
    %v491 = vadd.f32 %v412, %v490
    %v492 = vpop.f32.mrb[0].mxu0
    %493 = vmatprep.mubr.f32.mxu0 0.0
    %494 = vmatmul.mubr.f32.gmra.mrb[0].mxu0 %v217
    %v495 = vpop.f32.mrb[0].mxu0
    %v496 = vadd.f32 %v412, %v495
    %v497 = vpop.f32.mrb[0].mxu0
    %498 = vmatprep.mubr.f32.mxu0 0.0
    %499 = vmatmul.mubr.f32.gmra.mrb[0].mxu0 %v218
    %v500 = vpop.f32.mrb[0].mxu0
    %v501 = vadd.f32 %v412, %v500
    %v502 = vpop.f32.mrb[0].mxu0
    %503 = vmatprep.mubr.f32.mxu0 0.0
    %504 = vmatmul.mubr.f32.gmra.mrb[0].mxu0 %v219
    %v505 = vpop.f32.mrb[0].mxu0
    %v506 = vadd.f32 %v412, %v505
    %v507 = vpop.f32.mrb[0].mxu0
    %508 = vmatprep.mubr.f32.mxu0 0.0
    %509 = vmatmul.mubr.f32.gmra.mrb[0].mxu0 %v220
    %v510 = vpop.f32.mrb[0].mxu0
    %v511 = vadd.f32 %v412, %v510
    %v512 = vpop.f32.mrb[0].mxu0
    %513 = vmatprep.mubr.f32.mxu0 0.0
    %514 = vmatmul.mubr.f32.gmra.mrb[0].mxu0 %v221
    %v515 = vpop.f32.mrb[0].mxu0
    %v516 = vadd.f32 %v412, %v515
    %v517 = vpop.f32.mrb[0].mxu0
    %518 = vmatprep.mubr.f32.mxu0 0.0
    %519 = vmatmul.mubr.f32.gmra.mrb[0].mxu0 %v222
    %v520 = vpop.f32.mrb[0].mxu0
    %v521 = vadd.f32 %v412, %v520
    %v522 = vpop.f32.mrb[0].mxu0
    %523 = vmatprep.mubr.f32.mxu0 0.0
    %524 = vmatmul.mubr.f32.gmra.mrb[0].mxu0 %v223
    %v525 = vpop.f32.mrb[0].mxu0
    %v526 = vadd.f32 %v412, %v525
    %v527 = vpop.f32.mrb[0].mxu0
    %528 = vmatprep.mubr.f32.mxu0 0.0
    %529 = vmatmul.mubr.f32.gmra.mrb[0].mxu0 %v224
    %v530 = vpop.f32.mrb[0].mxu0
    %v531 = vadd.f32 %v412, %v530
    %v532 = vpop.f32.mrb[0].mxu0
    %533 = vmatprep.mubr.f32.mxu0 0.0
    %534 = vmatmul.mubr.f32.gmra.mrb[0].mxu0 %v225
    %v535 = vpop.f32.mrb[0].mxu0
    %v536 = vadd.f32 %v412, %v535
    %v537 = vpop.f32.mrb[0].mxu0
    %538 = vmatprep.mubr.f32.mxu0 0.0
    %539 = vmatmul.mubr.f32.gmra.mrb[0].mxu0 %v226
    %v540 = vpop.f32.mrb[0].mxu0
    %v541 = vadd.f32 %v412, %v540
    %v542 = vpop.f32.mrb[0].mxu0
    %543 = vmatprep.mubr.f32.mxu0 0.0
    %544 = vmatmul.mubr.f32.gmra.mrb[0].mxu0 %v227
    %v545 = vpop.f32.mrb[0].mxu0
    %v546 = vadd.f32 %v412, %v545
    %v547 = vpop.f32.mrb[0].mxu0
    %548 = vmatprep.mubr.f32.mxu0 0.0
    %549 = vmatmul.mubr.f32.gmra.mrb[0].mxu0 %v228
    %v550 = vpop.f32.mrb[0].mxu0
    %v551 = vadd.f32 %v412, %v550
    %v552 = vpop.f32.mrb[0].mxu0
    %553 = vmatprep.mubr.f32.mxu0 0.0
    %554 = vmatmul.mubr.f32.gmra.mrb[0].mxu0 %v229
    %v555 = vpop.f32.mrb[0].mxu0
    %v556 = vadd.f32 %v412, %v555
    %v557 = vpop.f32.mrb[0].mxu0
    %558 = vdwg.mxu0
    %v559 = vmax.f32 %v481, 0.0
    %v560 = vmax.f32 %v486, 0.0
    %v561 = vmax.f32 %v491, 0.0
    %v562 = vmax.f32 %v496, 0.0
    %v563 = vmax.f32 %v501, 0.0
    %v564 = vmax.f32 %v506, 0.0
    %v565 = vmax.f32 %v511, 0.0
    %v566 = vmax.f32 %v516, 0.0
    %v567 = vmax.f32 %v521, 0.0
    %v568 = vmax.f32 %v526, 0.0
    %v569 = vmax.f32 %v531, 0.0
    %v570 = vmax.f32 %v536, 0.0
    %v571 = vmax.f32 %v541, 0.0
    %v572 = vmax.f32 %v546, 0.0
    %v573 = vmax.f32 %v551, 0.0
    %v574 = vmax.f32 %v556, 0.0
    %s575 = scalar_lea.vmem [#allocation7], 128
    %v576 = vld [vmem:[%s575] sm:$0xff]
    %v577 = vld [vmem:[%s575 + $0x8] sm:$0xff]
    %v578 = vld [vmem:[%s575 + $0x10] sm:$0xff]
    %v579 = vld [vmem:[%s575 + $0x18] sm:$0xff]
    %v580 = vld [vmem:[%s575 + $0x20] sm:$0xff]
    %v581 = vld [vmem:[%s575 + $0x28] sm:$0xff]
    %v582 = vld [vmem:[%s575 + $0x30] sm:$0xff]
    %v583 = vld [vmem:[%s575 + $0x38] sm:$0xff]
    %v584 = vld [vmem:[%s575 + $0x40] sm:$0xff]
    %v585 = vld [vmem:[%s575 + $0x48] sm:$0xff]
    %v586 = vld [vmem:[%s575 + $0x50] sm:$0xff]
    %v587 = vld [vmem:[%s575 + $0x58] sm:$0xff]
    %v588 = vld [vmem:[%s575 + $0x60] sm:$0xff]
    %v589 = vld [vmem:[%s575 + $0x68] sm:$0xff]
    %v590 = vld [vmem:[%s575 + $0x70] sm:$0xff]
    %v591 = vld [vmem:[%s575 + $0x78] sm:$0xff]
    %592 = vmatprep.subr.mxu0 0.0
    %593 = vmatpush1.msra.mxu0 %v576
    %594 = vmatprep.subr.mxu0 0.0
    %595 = vmatpush1.msra.mxu0 %v577
    %596 = vmatprep.subr.mxu0 0.0
    %597 = vmatpush1.msra.mxu0 %v578
    %598 = vmatprep.subr.mxu0 0.0
    %599 = vmatpush1.msra.mxu0 %v579
    %600 = vmatprep.subr.mxu0 0.0
    %601 = vmatpush1.msra.mxu0 %v580
    %602 = vmatprep.subr.mxu0 0.0
    %603 = vmatpush1.msra.mxu0 %v581
    %604 = vmatprep.subr.mxu0 0.0
    %605 = vmatpush1.msra.mxu0 %v582
    %606 = vmatprep.subr.mxu0 0.0
    %607 = vmatpush1.msra.mxu0 %v583
    %608 = vmatprep.subr.mxu0 0.0
    %609 = vmatpush1.msra.mxu0 %v584
    %610 = vmatprep.subr.mxu0 0.0
    %611 = vmatpush1.msra.mxu0 %v585
    %612 = vmatprep.subr.mxu0 0.0
    %613 = vmatpush1.msra.mxu0 %v586
    %614 = vmatprep.subr.mxu0 0.0
    %615 = vmatpush1.msra.mxu0 %v587
    %616 = vmatprep.subr.mxu0 0.0
    %617 = vmatpush1.msra.mxu0 %v588
    %618 = vmatprep.subr.mxu0 0.0
    %619 = vmatpush1.msra.mxu0 %v589
    %620 = vmatprep.subr.mxu0 0.0
    %621 = vmatpush1.msra.mxu0 %v590
    %622 = vmatprep.subr.mxu0 0.0
    %623 = vmatpush1.msra.mxu0 %v591
    %624 = vmatprep.subr.mxu0 0.0
    %625 = vmatpush1.msra.mxu0 0.0
    %626 = vmatprep.subr.mxu0 0.0
    %627 = vmatpush1.msra.mxu0 0.0
    %628 = vmatprep.subr.mxu0 0.0
    %629 = vmatpush1.msra.mxu0 0.0
    %630 = vmatprep.subr.mxu0 0.0
    %631 = vmatpush1.msra.mxu0 0.0
    %632 = vmatprep.subr.mxu0 0.0
    %633 = vmatpush1.msra.mxu0 0.0
    %634 = vmatprep.subr.mxu0 0.0
    %635 = vmatpush1.msra.mxu0 0.0
    %636 = vmatprep.subr.mxu0 0.0
    %637 = vmatpush1.msra.mxu0 0.0
    %638 = vmatprep.subr.mxu0 0.0
    %639 = vmatpush1.msra.mxu0 0.0
    %640 = vmatprep.subr.mxu0 0.0
    %641 = vmatpush1.msra.mxu0 0.0
    %642 = vmatprep.subr.mxu0 0.0
    %643 = vmatpush1.msra.mxu0 0.0
    %644 = vmatprep.subr.mxu0 0.0
    %645 = vmatpush1.msra.mxu0 0.0
    %646 = vmatprep.subr.mxu0 0.0
    %647 = vmatpush1.msra.mxu0 0.0
    %648 = vmatprep.subr.mxu0 0.0
    %649 = vmatpush1.msra.mxu0 0.0
    %650 = vmatprep.subr.mxu0 0.0
    %651 = vmatpush1.msra.mxu0 0.0
    %652 = vmatprep.subr.mxu0 0.0
    %653 = vmatpush1.msra.mxu0 0.0
    %654 = vmatprep.subr.mxu0 0.0
    %655 = vmatpush1.msra.mxu0 0.0
    %656 = vmatprep.mubr.f32.mxu0 0.0
    %657 = vmatmul.mubr.f32.gmra.mrb[0].mxu0 %v559
    %v658 = vpop.f32.mrb[0].mxu0
    %v659 = vadd.f32 0.0, %v658
    %v660 = vpop.f32.mrb[0].mxu0
    %661 = vmatprep.mubr.f32.mxu0 0.0
    %662 = vmatmul.mubr.f32.gmra.mrb[0].mxu0 %v560
    %v663 = vpop.f32.mrb[0].mxu0
    %v664 = vadd.f32 0.0, %v663
    %v665 = vpop.f32.mrb[0].mxu0
    %666 = vmatprep.mubr.f32.mxu0 0.0
    %667 = vmatmul.mubr.f32.gmra.mrb[0].mxu0 %v561
    %v668 = vpop.f32.mrb[0].mxu0
    %v669 = vadd.f32 0.0, %v668
    %v670 = vpop.f32.mrb[0].mxu0
    %671 = vmatprep.mubr.f32.mxu0 0.0
    %672 = vmatmul.mubr.f32.gmra.mrb[0].mxu0 %v562
    %v673 = vpop.f32.mrb[0].mxu0
    %v674 = vadd.f32 0.0, %v673
    %v675 = vpop.f32.mrb[0].mxu0
    %676 = vmatprep.mubr.f32.mxu0 0.0
    %677 = vmatmul.mubr.f32.gmra.mrb[0].mxu0 %v563
    %v678 = vpop.f32.mrb[0].mxu0
    %v679 = vadd.f32 0.0, %v678
    %v680 = vpop.f32.mrb[0].mxu0
    %681 = vmatprep.mubr.f32.mxu0 0.0
    %682 = vmatmul.mubr.f32.gmra.mrb[0].mxu0 %v564
    %v683 = vpop.f32.mrb[0].mxu0
    %v684 = vadd.f32 0.0, %v683
    %v685 = vpop.f32.mrb[0].mxu0
    %686 = vmatprep.mubr.f32.mxu0 0.0
    %687 = vmatmul.mubr.f32.gmra.mrb[0].mxu0 %v565
    %v688 = vpop.f32.mrb[0].mxu0
    %v689 = vadd.f32 0.0, %v688
    %v690 = vpop.f32.mrb[0].mxu0
    %691 = vmatprep.mubr.f32.mxu0 0.0
    %692 = vmatmul.mubr.f32.gmra.mrb[0].mxu0 %v566
    %v693 = vpop.f32.mrb[0].mxu0
    %v694 = vadd.f32 0.0, %v693
    %v695 = vpop.f32.mrb[0].mxu0
    %696 = vmatprep.mubr.f32.mxu0 0.0
    %697 = vmatmul.mubr.f32.gmra.mrb[0].mxu0 %v567
    %v698 = vpop.f32.mrb[0].mxu0
    %v699 = vadd.f32 0.0, %v698
    %v700 = vpop.f32.mrb[0].mxu0
    %701 = vmatprep.mubr.f32.mxu0 0.0
    %702 = vmatmul.mubr.f32.gmra.mrb[0].mxu0 %v568
    %v703 = vpop.f32.mrb[0].mxu0
    %v704 = vadd.f32 0.0, %v703
    %v705 = vpop.f32.mrb[0].mxu0
    %706 = vmatprep.mubr.f32.mxu0 0.0
    %707 = vmatmul.mubr.f32.gmra.mrb[0].mxu0 %v569
    %v708 = vpop.f32.mrb[0].mxu0
    %v709 = vadd.f32 0.0, %v708
    %v710 = vpop.f32.mrb[0].mxu0
    %711 = vmatprep.mubr.f32.mxu0 0.0
    %712 = vmatmul.mubr.f32.gmra.mrb[0].mxu0 %v570
    %v713 = vpop.f32.mrb[0].mxu0
    %v714 = vadd.f32 0.0, %v713
    %v715 = vpop.f32.mrb[0].mxu0
    %716 = vmatprep.mubr.f32.mxu0 0.0
    %717 = vmatmul.mubr.f32.gmra.mrb[0].mxu0 %v571
    %v718 = vpop.f32.mrb[0].mxu0
    %v719 = vadd.f32 0.0, %v718
    %v720 = vpop.f32.mrb[0].mxu0
    %721 = vmatprep.mubr.f32.mxu0 0.0
    %722 = vmatmul.mubr.f32.gmra.mrb[0].mxu0 %v572
    %v723 = vpop.f32.mrb[0].mxu0
    %v724 = vadd.f32 0.0, %v723
    %v725 = vpop.f32.mrb[0].mxu0
    %726 = vmatprep.mubr.f32.mxu0 0.0
    %727 = vmatmul.mubr.f32.gmra.mrb[0].mxu0 %v573
    %v728 = vpop.f32.mrb[0].mxu0
    %v729 = vadd.f32 0.0, %v728
    %v730 = vpop.f32.mrb[0].mxu0
    %731 = vmatprep.mubr.f32.mxu0 0.0
    %732 = vmatmul.mubr.f32.gmra.mrb[0].mxu0 %v574
    %v733 = vpop.f32.mrb[0].mxu0
    %v734 = vadd.f32 0.0, %v733
    %v735 = vpop.f32.mrb[0].mxu0
    %736 = vdwg.mxu0
    %s737 = scalar_lea.vmem %s3, 1
    %v738 = vld [vmem:[%s737] sm:$0x1]
    %v740 = vlaneseq
    %v741 = vshrl.u32 %v740, 7
    %v742 = vsub.s32 0, %v741
    %v743 = vrot.slane %v738, %v742
    %745 = vmatprep.subr.mxu0 0.0
    %746 = vmatpush1.msra.mxu0 %v659
    %747 = vmatprep.subr.mxu0 0.0
    %748 = vmatpush1.msra.mxu0 %v664
    %749 = vmatprep.subr.mxu0 0.0
    %750 = vmatpush1.msra.mxu0 %v669
    %751 = vmatprep.subr.mxu0 0.0
    %752 = vmatpush1.msra.mxu0 %v674
    %753 = vmatprep.subr.mxu0 0.0
    %754 = vmatpush1.msra.mxu0 %v679
    %755 = vmatprep.subr.mxu0 0.0
    %756 = vmatpush1.msra.mxu0 %v684
    %757 = vmatprep.subr.mxu0 0.0
    %758 = vmatpush1.msra.mxu0 %v689
    %759 = vmatprep.subr.mxu0 0.0
    %760 = vmatpush1.msra.mxu0 %v694
    %761 = vmatprep.subr.mxu0 0.0
    %762 = vmatpush1.msra.mxu0 %v699
    %763 = vmatprep.subr.mxu0 0.0
    %764 = vmatpush1.msra.mxu0 %v704
    %765 = vmatprep.subr.mxu0 0.0
    %766 = vmatpush1.msra.mxu0 %v709
    %767 = vmatprep.subr.mxu0 0.0
    %768 = vmatpush1.msra.mxu0 %v714
    %769 = vmatprep.subr.mxu0 0.0
    %770 = vmatpush1.msra.mxu0 %v719
    %771 = vmatprep.subr.mxu0 0.0
    %772 = vmatpush1.msra.mxu0 %v724
    %773 = vmatprep.subr.mxu0 0.0
    %774 = vmatpush1.msra.mxu0 %v729
    %775 = vmatprep.subr.mxu0 0.0
    %776 = vmatpush1.msra.mxu0 %v734
    %777 = vmatprep.subr.mxu0 0.0
    %778 = vmatpush1.msra.mxu0 0.0
    %779 = vmatprep.subr.mxu0 0.0
    %780 = vmatpush1.msra.mxu0 0.0
    %781 = vmatprep.subr.mxu0 0.0
    %782 = vmatpush1.msra.mxu0 0.0
    %783 = vmatprep.subr.mxu0 0.0
    %784 = vmatpush1.msra.mxu0 0.0
    %785 = vmatprep.subr.mxu0 0.0
    %786 = vmatpush1.msra.mxu0 0.0
    %787 = vmatprep.subr.mxu0 0.0
    %788 = vmatpush1.msra.mxu0 0.0
    %789 = vmatprep.subr.mxu0 0.0
    %790 = vmatpush1.msra.mxu0 0.0
    %791 = vmatprep.subr.mxu0 0.0
    %792 = vmatpush1.msra.mxu0 0.0
    %793 = vmatprep.subr.mxu0 0.0
    %794 = vmatpush1.msra.mxu0 0.0
    %795 = vmatprep.subr.mxu0 0.0
    %796 = vmatpush1.msra.mxu0 0.0
    %797 = vmatprep.subr.mxu0 0.0
    %798 = vmatpush1.msra.mxu0 0.0
    %799 = vmatprep.subr.mxu0 0.0
    %800 = vmatpush1.msra.mxu0 0.0
    %801 = vmatprep.subr.mxu0 0.0
    %802 = vmatpush1.msra.mxu0 0.0
    %803 = vmatprep.subr.mxu0 0.0
    %804 = vmatpush1.msra.mxu0 0.0
    %805 = vmatprep.subr.mxu0 0.0
    %806 = vmatpush1.msra.mxu0 0.0
    %807 = vmatprep.subr.mxu0 0.0
    %808 = vmatpush1.msra.mxu0 0.0
    %809 = vmatprep.mubr.f32.mxu0 0.0
    %810 = vmatmul.mubr.f32.gmra.mrb[0].mxu0 %v214
    %v811 = vpop.f32.mrb[0].mxu0
    %v812 = vadd.f32 %v743, %v811
    %v813 = vpop.f32.mrb[0].mxu0
    %814 = vmatprep.mubr.f32.mxu0 0.0
    %815 = vmatmul.mubr.f32.gmra.mrb[0].mxu0 %v215
    %v816 = vpop.f32.mrb[0].mxu0
    %v817 = vadd.f32 %v743, %v816
    %v818 = vpop.f32.mrb[0].mxu0
    %819 = vmatprep.mubr.f32.mxu0 0.0
    %820 = vmatmul.mubr.f32.gmra.mrb[0].mxu0 %v216
    %v821 = vpop.f32.mrb[0].mxu0
    %v822 = vadd.f32 %v743, %v821
    %v823 = vpop.f32.mrb[0].mxu0
    %824 = vmatprep.mubr.f32.mxu0 0.0
    %825 = vmatmul.mubr.f32.gmra.mrb[0].mxu0 %v217
    %v826 = vpop.f32.mrb[0].mxu0
    %v827 = vadd.f32 %v743, %v826
    %v828 = vpop.f32.mrb[0].mxu0
    %829 = vmatprep.mubr.f32.mxu0 0.0
    %830 = vmatmul.mubr.f32.gmra.mrb[0].mxu0 %v218
    %v831 = vpop.f32.mrb[0].mxu0
    %v832 = vadd.f32 %v743, %v831
    %v833 = vpop.f32.mrb[0].mxu0
    %834 = vmatprep.mubr.f32.mxu0 0.0
    %835 = vmatmul.mubr.f32.gmra.mrb[0].mxu0 %v219
    %v836 = vpop.f32.mrb[0].mxu0
    %v837 = vadd.f32 %v743, %v836
    %v838 = vpop.f32.mrb[0].mxu0
    %839 = vmatprep.mubr.f32.mxu0 0.0
    %840 = vmatmul.mubr.f32.gmra.mrb[0].mxu0 %v220
    %v841 = vpop.f32.mrb[0].mxu0
    %v842 = vadd.f32 %v743, %v841
    %v843 = vpop.f32.mrb[0].mxu0
    %844 = vmatprep.mubr.f32.mxu0 0.0
    %845 = vmatmul.mubr.f32.gmra.mrb[0].mxu0 %v221
    %v846 = vpop.f32.mrb[0].mxu0
    %v847 = vadd.f32 %v743, %v846
    %v848 = vpop.f32.mrb[0].mxu0
    %849 = vmatprep.mubr.f32.mxu0 0.0
    %850 = vmatmul.mubr.f32.gmra.mrb[0].mxu0 %v222
    %v851 = vpop.f32.mrb[0].mxu0
    %v852 = vadd.f32 %v743, %v851
    %v853 = vpop.f32.mrb[0].mxu0
    %854 = vmatprep.mubr.f32.mxu0 0.0
    %855 = vmatmul.mubr.f32.gmra.mrb[0].mxu0 %v223
    %v856 = vpop.f32.mrb[0].mxu0
    %v857 = vadd.f32 %v743, %v856
    %v858 = vpop.f32.mrb[0].mxu0
    %859 = vmatprep.mubr.f32.mxu0 0.0
    %860 = vmatmul.mubr.f32.gmra.mrb[0].mxu0 %v224
    %v861 = vpop.f32.mrb[0].mxu0
    %v862 = vadd.f32 %v743, %v861
    %v863 = vpop.f32.mrb[0].mxu0
    %864 = vmatprep.mubr.f32.mxu0 0.0
    %865 = vmatmul.mubr.f32.gmra.mrb[0].mxu0 %v225
    %v866 = vpop.f32.mrb[0].mxu0
    %v867 = vadd.f32 %v743, %v866
    %v868 = vpop.f32.mrb[0].mxu0
    %869 = vmatprep.mubr.f32.mxu0 0.0
    %870 = vmatmul.mubr.f32.gmra.mrb[0].mxu0 %v226
    %v871 = vpop.f32.mrb[0].mxu0
    %v872 = vadd.f32 %v743, %v871
    %v873 = vpop.f32.mrb[0].mxu0
    %874 = vmatprep.mubr.f32.mxu0 0.0
    %875 = vmatmul.mubr.f32.gmra.mrb[0].mxu0 %v227
    %v876 = vpop.f32.mrb[0].mxu0
    %v877 = vadd.f32 %v743, %v876
    %v878 = vpop.f32.mrb[0].mxu0
    %879 = vmatprep.mubr.f32.mxu0 0.0
    %880 = vmatmul.mubr.f32.gmra.mrb[0].mxu0 %v228
    %v881 = vpop.f32.mrb[0].mxu0
    %v882 = vadd.f32 %v743, %v881
    %v883 = vpop.f32.mrb[0].mxu0
    %884 = vmatprep.mubr.f32.mxu0 0.0
    %885 = vmatmul.mubr.f32.gmra.mrb[0].mxu0 %v229
    %v886 = vpop.f32.mrb[0].mxu0
    %v887 = vadd.f32 %v743, %v886
    %v888 = vpop.f32.mrb[0].mxu0
    %889 = vdwg.mxu0
    %v890 = vmax.f32 %v812, 0.0
    %v891 = vmax.f32 %v817, 0.0
    %v892 = vmax.f32 %v822, 0.0
    %v893 = vmax.f32 %v827, 0.0
    %v894 = vmax.f32 %v832, 0.0
    %v895 = vmax.f32 %v837, 0.0
    %v896 = vmax.f32 %v842, 0.0
    %v897 = vmax.f32 %v847, 0.0
    %v898 = vmax.f32 %v852, 0.0
    %v899 = vmax.f32 %v857, 0.0
    %v900 = vmax.f32 %v862, 0.0
    %v901 = vmax.f32 %v867, 0.0
    %v902 = vmax.f32 %v872, 0.0
    %v903 = vmax.f32 %v877, 0.0
    %v904 = vmax.f32 %v882, 0.0
    %v905 = vmax.f32 %v887, 0.0
    %v906 = vld [vmem:[%s4] sm:$0xff]
    %907 = vmatprep.subr.mxu0 0.0
    %908 = vmatpush1.msra.mxu0 %v890
    %909 = vmatprep.subr.mxu0 0.0
    %910 = vmatpush1.msra.mxu0 %v891
    %911 = vmatprep.subr.mxu0 0.0
    %912 = vmatpush1.msra.mxu0 %v892
    %913 = vmatprep.subr.mxu0 0.0
    %914 = vmatpush1.msra.mxu0 %v893
    %915 = vmatprep.subr.mxu0 0.0
    %916 = vmatpush1.msra.mxu0 %v894
    %917 = vmatprep.subr.mxu0 0.0
    %918 = vmatpush1.msra.mxu0 %v895
    %919 = vmatprep.subr.mxu0 0.0
    %920 = vmatpush1.msra.mxu0 %v896
    %921 = vmatprep.subr.mxu0 0.0
    %922 = vmatpush1.msra.mxu0 %v897
    %923 = vmatprep.subr.mxu0 0.0
    %924 = vmatpush1.msra.mxu0 %v898
    %925 = vmatprep.subr.mxu0 0.0
    %926 = vmatpush1.msra.mxu0 %v899
    %927 = vmatprep.subr.mxu0 0.0
    %928 = vmatpush1.msra.mxu0 %v900
    %929 = vmatprep.subr.mxu0 0.0
    %930 = vmatpush1.msra.mxu0 %v901
    %931 = vmatprep.subr.mxu0 0.0
    %932 = vmatpush1.msra.mxu0 %v902
    %933 = vmatprep.subr.mxu0 0.0
    %934 = vmatpush1.msra.mxu0 %v903
    %935 = vmatprep.subr.mxu0 0.0
    %936 = vmatpush1.msra.mxu0 %v904
    %937 = vmatprep.subr.mxu0 0.0
    %938 = vmatpush1.msra.mxu0 %v905
    %939 = vmatprep.subr.mxu0 0.0
    %940 = vmatpush1.msra.mxu0 0.0
    %941 = vmatprep.subr.mxu0 0.0
    %942 = vmatpush1.msra.mxu0 0.0
    %943 = vmatprep.subr.mxu0 0.0
    %944 = vmatpush1.msra.mxu0 0.0
    %945 = vmatprep.subr.mxu0 0.0
    %946 = vmatpush1.msra.mxu0 0.0
    %947 = vmatprep.subr.mxu0 0.0
    %948 = vmatpush1.msra.mxu0 0.0
    %949 = vmatprep.subr.mxu0 0.0
    %950 = vmatpush1.msra.mxu0 0.0
    %951 = vmatprep.subr.mxu0 0.0
    %952 = vmatpush1.msra.mxu0 0.0
    %953 = vmatprep.subr.mxu0 0.0
    %954 = vmatpush1.msra.mxu0 0.0
    %955 = vmatprep.subr.mxu0 0.0
    %956 = vmatpush1.msra.mxu0 0.0
    %957 = vmatprep.subr.mxu0 0.0
    %958 = vmatpush1.msra.mxu0 0.0
    %959 = vmatprep.subr.mxu0 0.0
    %960 = vmatpush1.msra.mxu0 0.0
    %961 = vmatprep.subr.mxu0 0.0
    %962 = vmatpush1.msra.mxu0 0.0
    %963 = vmatprep.subr.mxu0 0.0
    %964 = vmatpush1.msra.mxu0 0.0
    %965 = vmatprep.subr.mxu0 0.0
    %966 = vmatpush1.msra.mxu0 0.0
    %967 = vmatprep.subr.mxu0 0.0
    %968 = vmatpush1.msra.mxu0 0.0
    %969 = vmatprep.subr.mxu0 0.0
    %970 = vmatpush1.msra.mxu0 0.0
    %971 = vmatprep.mubr.f32.mxu0 0.0
    %972 = vmatmul.mubr.f32.gmra.mrb[0].mxu0 %v906
    %v973 = vpop.f32.mrb[0].mxu0
    %v974 = vadd.f32 0.0, %v973
    %v975 = vpop.f32.mrb[0].mxu0
    %976 = vdwg.mxu0
    %v977 = vld [vmem:[%s5] sm:$0xff]
    %978 = vmatprep.subr.mxu0 0.0
    %979 = vmatpush1.msra.mxu0 %v890
    %980 = vmatprep.subr.mxu0 0.0
    %981 = vmatpush1.msra.mxu0 %v891
    %982 = vmatprep.subr.mxu0 0.0
    %983 = vmatpush1.msra.mxu0 %v892
    %984 = vmatprep.subr.mxu0 0.0
    %985 = vmatpush1.msra.mxu0 %v893
    %986 = vmatprep.subr.mxu0 0.0
    %987 = vmatpush1.msra.mxu0 %v894
    %988 = vmatprep.subr.mxu0 0.0
    %989 = vmatpush1.msra.mxu0 %v895
    %990 = vmatprep.subr.mxu0 0.0
    %991 = vmatpush1.msra.mxu0 %v896
    %992 = vmatprep.subr.mxu0 0.0
    %993 = vmatpush1.msra.mxu0 %v897
    %994 = vmatprep.subr.mxu0 0.0
    %995 = vmatpush1.msra.mxu0 %v898
    %996 = vmatprep.subr.mxu0 0.0
    %997 = vmatpush1.msra.mxu0 %v899
    %998 = vmatprep.subr.mxu0 0.0
    %999 = vmatpush1.msra.mxu0 %v900
    %1000 = vmatprep.subr.mxu0 0.0
    %1001 = vmatpush1.msra.mxu0 %v901
    %1002 = vmatprep.subr.mxu0 0.0
    %1003 = vmatpush1.msra.mxu0 %v902
    %1004 = vmatprep.subr.mxu0 0.0
    %1005 = vmatpush1.msra.mxu0 %v903
    %1006 = vmatprep.subr.mxu0 0.0
    %1007 = vmatpush1.msra.mxu0 %v904
    %1008 = vmatprep.subr.mxu0 0.0
    %1009 = vmatpush1.msra.mxu0 %v905
    %1010 = vmatprep.subr.mxu0 0.0
    %1011 = vmatpush1.msra.mxu0 0.0
    %1012 = vmatprep.subr.mxu0 0.0
    %1013 = vmatpush1.msra.mxu0 0.0
    %1014 = vmatprep.subr.mxu0 0.0
    %1015 = vmatpush1.msra.mxu0 0.0
    %1016 = vmatprep.subr.mxu0 0.0
    %1017 = vmatpush1.msra.mxu0 0.0
    %1018 = vmatprep.subr.mxu0 0.0
    %1019 = vmatpush1.msra.mxu0 0.0
    %1020 = vmatprep.subr.mxu0 0.0
    %1021 = vmatpush1.msra.mxu0 0.0
    %1022 = vmatprep.subr.mxu0 0.0
    %1023 = vmatpush1.msra.mxu0 0.0
    %1024 = vmatprep.subr.mxu0 0.0
    %1025 = vmatpush1.msra.mxu0 0.0
    %1026 = vmatprep.subr.mxu0 0.0
    %1027 = vmatpush1.msra.mxu0 0.0
    %1028 = vmatprep.subr.mxu0 0.0
    %1029 = vmatpush1.msra.mxu0 0.0
    %1030 = vmatprep.subr.mxu0 0.0
    %1031 = vmatpush1.msra.mxu0 0.0
    %1032 = vmatprep.subr.mxu0 0.0
    %1033 = vmatpush1.msra.mxu0 0.0
    %1034 = vmatprep.subr.mxu0 0.0
    %1035 = vmatpush1.msra.mxu0 0.0
    %1036 = vmatprep.subr.mxu0 0.0
    %1037 = vmatpush1.msra.mxu0 0.0
    %1038 = vmatprep.subr.mxu0 0.0
    %1039 = vmatpush1.msra.mxu0 0.0
    %1040 = vmatprep.subr.mxu0 0.0
    %1041 = vmatpush1.msra.mxu0 0.0
    %1042 = vmatprep.mubr.f32.mxu0 0.0
    %1043 = vmatmul.mubr.f32.gmra.mrb[0].mxu0 %v977
    %v1044 = vpop.f32.mrb[0].mxu0
    %v1045 = vadd.f32 0.0, %v1044
    %v1046 = vpop.f32.mrb[0].mxu0
    %1047 = vdwg.mxu0
    %v1048 = vld [vmem:[#allocation10] sm:$0xff]
    %v1049 = vld [vmem:[#allocation10 + $0x8] sm:$0xff]
    %v1050 = vld [vmem:[#allocation10 + $0x10] sm:$0xff]
    %v1051 = vld [vmem:[#allocation10 + $0x18] sm:$0xff]
    %v1052 = vld [vmem:[#allocation10 + $0x20] sm:$0xff]
    %v1053 = vld [vmem:[#allocation10 + $0x28] sm:$0xff]
    %v1054 = vld [vmem:[#allocation10 + $0x30] sm:$0xff]
    %v1055 = vld [vmem:[#allocation10 + $0x38] sm:$0xff]
    %v1056 = vld [vmem:[#allocation10 + $0x40] sm:$0xff]
    %v1057 = vld [vmem:[#allocation10 + $0x48] sm:$0xff]
    %v1058 = vld [vmem:[#allocation10 + $0x50] sm:$0xff]
    %v1059 = vld [vmem:[#allocation10 + $0x58] sm:$0xff]
    %v1060 = vld [vmem:[#allocation10 + $0x60] sm:$0xff]
    %v1061 = vld [vmem:[#allocation10 + $0x68] sm:$0xff]
    %v1062 = vld [vmem:[#allocation10 + $0x70] sm:$0xff]
    %v1063 = vld [vmem:[#allocation10 + $0x78] sm:$0xff]
    %v1064 = vld [vmem:[#allocation8] sm:$0xff]
    %s1065 = scalar_lea.vmem [#allocation10], 128
    %v1066 = vld [vmem:[%s1065] sm:$0xff]
    %v1067 = vld [vmem:[%s1065 + $0x8] sm:$0xff]
    %v1068 = vld [vmem:[%s1065 + $0x10] sm:$0xff]
    %v1069 = vld [vmem:[%s1065 + $0x18] sm:$0xff]
    %v1070 = vld [vmem:[%s1065 + $0x20] sm:$0xff]
    %v1071 = vld [vmem:[%s1065 + $0x28] sm:$0xff]
    %v1072 = vld [vmem:[%s1065 + $0x30] sm:$0xff]
    %v1073 = vld [vmem:[%s1065 + $0x38] sm:$0xff]
    %v1074 = vld [vmem:[%s1065 + $0x40] sm:$0xff]
    %v1075 = vld [vmem:[%s1065 + $0x48] sm:$0xff]
    %v1076 = vld [vmem:[%s1065 + $0x50] sm:$0xff]
    %v1077 = vld [vmem:[%s1065 + $0x58] sm:$0xff]
    %v1078 = vld [vmem:[%s1065 + $0x60] sm:$0xff]
    %v1079 = vld [vmem:[%s1065 + $0x68] sm:$0xff]
    %v1080 = vld [vmem:[%s1065 + $0x70] sm:$0xff]
    %v1081 = vld [vmem:[%s1065 + $0x78] sm:$0xff]
    %1082 = vmatprep.subr.mxu0 0.0
    %1083 = vmatpush1.msra.mxu0 %v1066
    %1084 = vmatprep.subr.mxu0 0.0
    %1085 = vmatpush1.msra.mxu0 %v1067
    %1086 = vmatprep.subr.mxu0 0.0
    %1087 = vmatpush1.msra.mxu0 %v1068
    %1088 = vmatprep.subr.mxu0 0.0
    %1089 = vmatpush1.msra.mxu0 %v1069
    %1090 = vmatprep.subr.mxu0 0.0
    %1091 = vmatpush1.msra.mxu0 %v1070
    %1092 = vmatprep.subr.mxu0 0.0
    %1093 = vmatpush1.msra.mxu0 %v1071
    %1094 = vmatprep.subr.mxu0 0.0
    %1095 = vmatpush1.msra.mxu0 %v1072
    %1096 = vmatprep.subr.mxu0 0.0
    %1097 = vmatpush1.msra.mxu0 %v1073
    %1098 = vmatprep.subr.mxu0 0.0
    %1099 = vmatpush1.msra.mxu0 %v1074
    %1100 = vmatprep.subr.mxu0 0.0
    %1101 = vmatpush1.msra.mxu0 %v1075
    %1102 = vmatprep.subr.mxu0 0.0
    %1103 = vmatpush1.msra.mxu0 %v1076
    %1104 = vmatprep.subr.mxu0 0.0
    %1105 = vmatpush1.msra.mxu0 %v1077
    %1106 = vmatprep.subr.mxu0 0.0
    %1107 = vmatpush1.msra.mxu0 %v1078
    %1108 = vmatprep.subr.mxu0 0.0
    %1109 = vmatpush1.msra.mxu0 %v1079
    %1110 = vmatprep.subr.mxu0 0.0
    %1111 = vmatpush1.msra.mxu0 %v1080
    %1112 = vmatprep.subr.mxu0 0.0
    %1113 = vmatpush1.msra.mxu0 %v1081
    %1114 = vmatprep.subr.mxu0 0.0
    %1115 = vmatpush1.msra.mxu0 0.0
    %1116 = vmatprep.subr.mxu0 0.0
    %1117 = vmatpush1.msra.mxu0 0.0
    %1118 = vmatprep.subr.mxu0 0.0
    %1119 = vmatpush1.msra.mxu0 0.0
    %1120 = vmatprep.subr.mxu0 0.0
    %1121 = vmatpush1.msra.mxu0 0.0
    %1122 = vmatprep.subr.mxu0 0.0
    %1123 = vmatpush1.msra.mxu0 0.0
    %1124 = vmatprep.subr.mxu0 0.0
    %1125 = vmatpush1.msra.mxu0 0.0
    %1126 = vmatprep.subr.mxu0 0.0
    %1127 = vmatpush1.msra.mxu0 0.0
    %1128 = vmatprep.subr.mxu0 0.0
    %1129 = vmatpush1.msra.mxu0 0.0
    %1130 = vmatprep.subr.mxu0 0.0
    %1131 = vmatpush1.msra.mxu0 0.0
    %1132 = vmatprep.subr.mxu0 0.0
    %1133 = vmatpush1.msra.mxu0 0.0
    %1134 = vmatprep.subr.mxu0 0.0
    %1135 = vmatpush1.msra.mxu0 0.0
    %1136 = vmatprep.subr.mxu0 0.0
    %1137 = vmatpush1.msra.mxu0 0.0
    %1138 = vmatprep.subr.mxu0 0.0
    %1139 = vmatpush1.msra.mxu0 0.0
    %1140 = vmatprep.subr.mxu0 0.0
    %1141 = vmatpush1.msra.mxu0 0.0
    %1142 = vmatprep.subr.mxu0 0.0
    %1143 = vmatpush1.msra.mxu0 0.0
    %1144 = vmatprep.subr.mxu0 0.0
    %1145 = vmatpush1.msra.mxu0 0.0
    %1146 = vmatprep.mubr.f32.mxu0 0.0
    %1147 = vmatmul.mubr.f32.gmra.mrb[0].mxu0 %v1064
    %v1148 = vpop.f32.mrb[0].mxu0
    %v1149 = vadd.f32 0.0, %v1148
    %v1150 = vpop.f32.mrb[0].mxu0
    %1151 = vdwg.mxu0
    %1152 = vmatprep.subr.mxu0 0.0
    %1153 = vmatpush1.msra.mxu0 %v1048
    %1154 = vmatprep.subr.mxu0 0.0
    %1155 = vmatpush1.msra.mxu0 %v1049
    %1156 = vmatprep.subr.mxu0 0.0
    %1157 = vmatpush1.msra.mxu0 %v1050
    %1158 = vmatprep.subr.mxu0 0.0
    %1159 = vmatpush1.msra.mxu0 %v1051
    %1160 = vmatprep.subr.mxu0 0.0
    %1161 = vmatpush1.msra.mxu0 %v1052
    %1162 = vmatprep.subr.mxu0 0.0
    %1163 = vmatpush1.msra.mxu0 %v1053
    %1164 = vmatprep.subr.mxu0 0.0
    %1165 = vmatpush1.msra.mxu0 %v1054
    %1166 = vmatprep.subr.mxu0 0.0
    %1167 = vmatpush1.msra.mxu0 %v1055
    %1168 = vmatprep.subr.mxu0 0.0
    %1169 = vmatpush1.msra.mxu0 %v1056
    %1170 = vmatprep.subr.mxu0 0.0
    %1171 = vmatpush1.msra.mxu0 %v1057
    %1172 = vmatprep.subr.mxu0 0.0
    %1173 = vmatpush1.msra.mxu0 %v1058
    %1174 = vmatprep.subr.mxu0 0.0
    %1175 = vmatpush1.msra.mxu0 %v1059
    %1176 = vmatprep.subr.mxu0 0.0
    %1177 = vmatpush1.msra.mxu0 %v1060
    %1178 = vmatprep.subr.mxu0 0.0
    %1179 = vmatpush1.msra.mxu0 %v1061
    %1180 = vmatprep.subr.mxu0 0.0
    %1181 = vmatpush1.msra.mxu0 %v1062
    %1182 = vmatprep.subr.mxu0 0.0
    %1183 = vmatpush1.msra.mxu0 %v1063
    %1184 = vmatprep.subr.mxu0 0.0
    %1185 = vmatpush1.msra.mxu0 0.0
    %1186 = vmatprep.subr.mxu0 0.0
    %1187 = vmatpush1.msra.mxu0 0.0
    %1188 = vmatprep.subr.mxu0 0.0
    %1189 = vmatpush1.msra.mxu0 0.0
    %1190 = vmatprep.subr.mxu0 0.0
    %1191 = vmatpush1.msra.mxu0 0.0
    %1192 = vmatprep.subr.mxu0 0.0
    %1193 = vmatpush1.msra.mxu0 0.0
    %1194 = vmatprep.subr.mxu0 0.0
    %1195 = vmatpush1.msra.mxu0 0.0
    %1196 = vmatprep.subr.mxu0 0.0
    %1197 = vmatpush1.msra.mxu0 0.0
    %1198 = vmatprep.subr.mxu0 0.0
    %1199 = vmatpush1.msra.mxu0 0.0
    %1200 = vmatprep.subr.mxu0 0.0
    %1201 = vmatpush1.msra.mxu0 0.0
    %1202 = vmatprep.subr.mxu0 0.0
    %1203 = vmatpush1.msra.mxu0 0.0
    %1204 = vmatprep.subr.mxu0 0.0
    %1205 = vmatpush1.msra.mxu0 0.0
    %1206 = vmatprep.subr.mxu0 0.0
    %1207 = vmatpush1.msra.mxu0 0.0
    %1208 = vmatprep.subr.mxu0 0.0
    %1209 = vmatpush1.msra.mxu0 0.0
    %1210 = vmatprep.subr.mxu0 0.0
    %1211 = vmatpush1.msra.mxu0 0.0
    %1212 = vmatprep.subr.mxu0 0.0
    %1213 = vmatpush1.msra.mxu0 0.0
    %1214 = vmatprep.subr.mxu0 0.0
    %1215 = vmatpush1.msra.mxu0 0.0
    %1216 = vmatprep.mubr.f32.mxu0 0.0
    %1217 = vmatmul.mubr.f32.gmra.mrb[0].mxu0 %v974
    %v1218 = vpop.f32.mrb[0].mxu0
    %v1219 = vadd.f32 %v1149, %v1218
    %v1220 = vpop.f32.mrb[0].mxu0
    %1221 = vdwg.mxu0
    %s1222 = scalar_lea.vmem [#allocation10], 256
    %v1223 = vld [vmem:[%s1222] sm:$0xff]
    %v1224 = vld [vmem:[%s1222 + $0x8] sm:$0xff]
    %v1225 = vld [vmem:[%s1222 + $0x10] sm:$0xff]
    %v1226 = vld [vmem:[%s1222 + $0x18] sm:$0xff]
    %v1227 = vld [vmem:[%s1222 + $0x20] sm:$0xff]
    %v1228 = vld [vmem:[%s1222 + $0x28] sm:$0xff]
    %v1229 = vld [vmem:[%s1222 + $0x30] sm:$0xff]
    %v1230 = vld [vmem:[%s1222 + $0x38] sm:$0xff]
    %v1231 = vld [vmem:[%s1222 + $0x40] sm:$0xff]
    %v1232 = vld [vmem:[%s1222 + $0x48] sm:$0xff]
    %v1233 = vld [vmem:[%s1222 + $0x50] sm:$0xff]
    %v1234 = vld [vmem:[%s1222 + $0x58] sm:$0xff]
    %v1235 = vld [vmem:[%s1222 + $0x60] sm:$0xff]
    %v1236 = vld [vmem:[%s1222 + $0x68] sm:$0xff]
    %v1237 = vld [vmem:[%s1222 + $0x70] sm:$0xff]
    %v1238 = vld [vmem:[%s1222 + $0x78] sm:$0xff]
    %1239 = vmatprep.subr.mxu0 0.0
    %1240 = vmatpush1.msra.mxu0 %v1223
    %1241 = vmatprep.subr.mxu0 0.0
    %1242 = vmatpush1.msra.mxu0 %v1224
    %1243 = vmatprep.subr.mxu0 0.0
    %1244 = vmatpush1.msra.mxu0 %v1225
    %1245 = vmatprep.subr.mxu0 0.0
    %1246 = vmatpush1.msra.mxu0 %v1226
    %1247 = vmatprep.subr.mxu0 0.0
    %1248 = vmatpush1.msra.mxu0 %v1227
    %1249 = vmatprep.subr.mxu0 0.0
    %1250 = vmatpush1.msra.mxu0 %v1228
    %1251 = vmatprep.subr.mxu0 0.0
    %1252 = vmatpush1.msra.mxu0 %v1229
    %1253 = vmatprep.subr.mxu0 0.0
    %1254 = vmatpush1.msra.mxu0 %v1230
    %1255 = vmatprep.subr.mxu0 0.0
    %1256 = vmatpush1.msra.mxu0 %v1231
    %1257 = vmatprep.subr.mxu0 0.0
    %1258 = vmatpush1.msra.mxu0 %v1232
    %1259 = vmatprep.subr.mxu0 0.0
    %1260 = vmatpush1.msra.mxu0 %v1233
    %1261 = vmatprep.subr.mxu0 0.0
    %1262 = vmatpush1.msra.mxu0 %v1234
    %1263 = vmatprep.subr.mxu0 0.0
    %1264 = vmatpush1.msra.mxu0 %v1235
    %1265 = vmatprep.subr.mxu0 0.0
    %1266 = vmatpush1.msra.mxu0 %v1236
    %1267 = vmatprep.subr.mxu0 0.0
    %1268 = vmatpush1.msra.mxu0 %v1237
    %1269 = vmatprep.subr.mxu0 0.0
    %1270 = vmatpush1.msra.mxu0 %v1238
    %1271 = vmatprep.subr.mxu0 0.0
    %1272 = vmatpush1.msra.mxu0 0.0
    %1273 = vmatprep.subr.mxu0 0.0
    %1274 = vmatpush1.msra.mxu0 0.0
    %1275 = vmatprep.subr.mxu0 0.0
    %1276 = vmatpush1.msra.mxu0 0.0
    %1277 = vmatprep.subr.mxu0 0.0
    %1278 = vmatpush1.msra.mxu0 0.0
    %1279 = vmatprep.subr.mxu0 0.0
    %1280 = vmatpush1.msra.mxu0 0.0
    %1281 = vmatprep.subr.mxu0 0.0
    %1282 = vmatpush1.msra.mxu0 0.0
    %1283 = vmatprep.subr.mxu0 0.0
    %1284 = vmatpush1.msra.mxu0 0.0
    %1285 = vmatprep.subr.mxu0 0.0
    %1286 = vmatpush1.msra.mxu0 0.0
    %1287 = vmatprep.subr.mxu0 0.0
    %1288 = vmatpush1.msra.mxu0 0.0
    %1289 = vmatprep.subr.mxu0 0.0
    %1290 = vmatpush1.msra.mxu0 0.0
    %1291 = vmatprep.subr.mxu0 0.0
    %1292 = vmatpush1.msra.mxu0 0.0
    %1293 = vmatprep.subr.mxu0 0.0
    %1294 = vmatpush1.msra.mxu0 0.0
    %1295 = vmatprep.subr.mxu0 0.0
    %1296 = vmatpush1.msra.mxu0 0.0
    %1297 = vmatprep.subr.mxu0 0.0
    %1298 = vmatpush1.msra.mxu0 0.0
    %1299 = vmatprep.subr.mxu0 0.0
    %1300 = vmatpush1.msra.mxu0 0.0
    %1301 = vmatprep.subr.mxu0 0.0
    %1302 = vmatpush1.msra.mxu0 0.0
    %1303 = vmatprep.mubr.f32.mxu0 0.0
    %1304 = vmatmul.mubr.f32.gmra.mrb[0].mxu0 %v1045
    %v1305 = vpop.f32.mrb[0].mxu0
    %v1306 = vadd.f32 0.0, %v1305
    %v1307 = vpop.f32.mrb[0].mxu0
    %1308 = vdwg.mxu0
    %v1309 = vadd.f32 %v1219, %v1306
    %v1310 = vld [vmem:[#allocation11] sm:$0x1]
    %v1312 = vlaneseq
    %v1313 = vshrl.u32 %v1312, 7
    %v1314 = vsub.s32 0, %v1313
    %v1315 = vrot.slane %v1310, %v1314
    %v1317 = vadd.f32 %v1309, %v1315
    %v1318 = vmax.f32 %v1317, 0.0
    %v1319 = vld [vmem:[#allocation13] sm:$0xff]
    %v1320 = vld [vmem:[#allocation13 + $0x8] sm:$0xff]
    %v1321 = vld [vmem:[#allocation13 + $0x10] sm:$0xff]
    %v1322 = vld [vmem:[#allocation13 + $0x18] sm:$0xff]
    %v1323 = vld [vmem:[#allocation13 + $0x20] sm:$0xff]
    %v1324 = vld [vmem:[#allocation13 + $0x28] sm:$0xff]
    %v1325 = vld [vmem:[#allocation13 + $0x30] sm:$0xff]
    %v1326 = vld [vmem:[#allocation13 + $0x38] sm:$0xff]
    %v1327 = vld [vmem:[#allocation13 + $0x40] sm:$0xff]
    %v1328 = vld [vmem:[#allocation13 + $0x48] sm:$0xff]
    %v1329 = vld [vmem:[#allocation13 + $0x50] sm:$0xff]
    %v1330 = vld [vmem:[#allocation13 + $0x58] sm:$0xff]
    %v1331 = vld [vmem:[#allocation13 + $0x60] sm:$0xff]
    %v1332 = vld [vmem:[#allocation13 + $0x68] sm:$0xff]
    %v1333 = vld [vmem:[#allocation13 + $0x70] sm:$0xff]
    %v1334 = vld [vmem:[#allocation13 + $0x78] sm:$0xff]
    %v1335 = vld [vmem:[%s10] sm:$0x1]
    %v1337 = vlaneseq
    %v1338 = vshrl.u32 %v1337, 7
    %v1339 = vsub.s32 0, %v1338
    %v1340 = vrot.slane %v1335, %v1339
    %1342 = vmatprep.subr.mxu0 0.0
    %1343 = vmatpush1.msra.mxu0 %v1319
    %1344 = vmatprep.subr.mxu0 0.0
    %1345 = vmatpush1.msra.mxu0 %v1320
    %1346 = vmatprep.subr.mxu0 0.0
    %1347 = vmatpush1.msra.mxu0 %v1321
    %1348 = vmatprep.subr.mxu0 0.0
    %1349 = vmatpush1.msra.mxu0 %v1322
    %1350 = vmatprep.subr.mxu0 0.0
    %1351 = vmatpush1.msra.mxu0 %v1323
    %1352 = vmatprep.subr.mxu0 0.0
    %1353 = vmatpush1.msra.mxu0 %v1324
    %1354 = vmatprep.subr.mxu0 0.0
    %1355 = vmatpush1.msra.mxu0 %v1325
    %1356 = vmatprep.subr.mxu0 0.0
    %1357 = vmatpush1.msra.mxu0 %v1326
    %1358 = vmatprep.subr.mxu0 0.0
    %1359 = vmatpush1.msra.mxu0 %v1327
    %1360 = vmatprep.subr.mxu0 0.0
    %1361 = vmatpush1.msra.mxu0 %v1328
    %1362 = vmatprep.subr.mxu0 0.0
    %1363 = vmatpush1.msra.mxu0 %v1329
    %1364 = vmatprep.subr.mxu0 0.0
    %1365 = vmatpush1.msra.mxu0 %v1330
    %1366 = vmatprep.subr.mxu0 0.0
    %1367 = vmatpush1.msra.mxu0 %v1331
    %1368 = vmatprep.subr.mxu0 0.0
    %1369 = vmatpush1.msra.mxu0 %v1332
    %1370 = vmatprep.subr.mxu0 0.0
    %1371 = vmatpush1.msra.mxu0 %v1333
    %1372 = vmatprep.subr.mxu0 0.0
    %1373 = vmatpush1.msra.mxu0 %v1334
    %1374 = vmatprep.subr.mxu0 0.0
    %1375 = vmatpush1.msra.mxu0 0.0
    %1376 = vmatprep.subr.mxu0 0.0
    %1377 = vmatpush1.msra.mxu0 0.0
    %1378 = vmatprep.subr.mxu0 0.0
    %1379 = vmatpush1.msra.mxu0 0.0
    %1380 = vmatprep.subr.mxu0 0.0
    %1381 = vmatpush1.msra.mxu0 0.0
    %1382 = vmatprep.subr.mxu0 0.0
    %1383 = vmatpush1.msra.mxu0 0.0
    %1384 = vmatprep.subr.mxu0 0.0
    %1385 = vmatpush1.msra.mxu0 0.0
    %1386 = vmatprep.subr.mxu0 0.0
    %1387 = vmatpush1.msra.mxu0 0.0
    %1388 = vmatprep.subr.mxu0 0.0
    %1389 = vmatpush1.msra.mxu0 0.0
    %1390 = vmatprep.subr.mxu0 0.0
    %1391 = vmatpush1.msra.mxu0 0.0
    %1392 = vmatprep.subr.mxu0 0.0
    %1393 = vmatpush1.msra.mxu0 0.0
    %1394 = vmatprep.subr.mxu0 0.0
    %1395 = vmatpush1.msra.mxu0 0.0
    %1396 = vmatprep.subr.mxu0 0.0
    %1397 = vmatpush1.msra.mxu0 0.0
    %1398 = vmatprep.subr.mxu0 0.0
    %1399 = vmatpush1.msra.mxu0 0.0
    %1400 = vmatprep.subr.mxu0 0.0
    %1401 = vmatpush1.msra.mxu0 0.0
    %1402 = vmatprep.subr.mxu0 0.0
    %1403 = vmatpush1.msra.mxu0 0.0
    %1404 = vmatprep.subr.mxu0 0.0
    %1405 = vmatpush1.msra.mxu0 0.0
    %1406 = vmatprep.mubr.f32.mxu0 0.0
    %1407 = vmatmul.mubr.f32.gmra.mrb[0].mxu0 %v1318
    %v1408 = vpop.f32.mrb[0].mxu0
    %v1409 = vadd.f32 %v1340, %v1408
    %v1410 = vpop.f32.mrb[0].mxu0
    %1411 = vdwg.mxu0
    %v1412 = vmax.f32 %v1409, 0.0
    %v1413 = vld [vmem:[#allocation14] sm:$0xff]
    %v1414 = vld [vmem:[#allocation14 + $0x8] sm:$0xff]
    %v1415 = vld [vmem:[#allocation14 + $0x10] sm:$0xff]
    %v1416 = vld [vmem:[#allocation14 + $0x18] sm:$0xff]
    %v1417 = vld [vmem:[#allocation14 + $0x20] sm:$0xff]
    %v1418 = vld [vmem:[#allocation14 + $0x28] sm:$0xff]
    %v1419 = vld [vmem:[#allocation14 + $0x30] sm:$0xff]
    %v1420 = vld [vmem:[#allocation14 + $0x38] sm:$0xff]
    %v1421 = vld [vmem:[#allocation14 + $0x40] sm:$0xff]
    %v1422 = vld [vmem:[#allocation14 + $0x48] sm:$0xff]
    %v1423 = vld [vmem:[#allocation14 + $0x50] sm:$0xff]
    %v1424 = vld [vmem:[#allocation14 + $0x58] sm:$0xff]
    %v1425 = vld [vmem:[#allocation14 + $0x60] sm:$0xff]
    %v1426 = vld [vmem:[#allocation14 + $0x68] sm:$0xff]
    %v1427 = vld [vmem:[#allocation14 + $0x70] sm:$0xff]
    %v1428 = vld [vmem:[#allocation14 + $0x78] sm:$0xff]
    %v1429 = vld [vmem:[%s12] sm:$0x1]
    %v1431 = vlaneseq
    %v1432 = vshrl.u32 %v1431, 7
    %v1433 = vsub.s32 0, %v1432
    %v1434 = vrot.slane %v1429, %v1433
    %1436 = vmatprep.subr.mxu0 0.0
    %1437 = vmatpush1.msra.mxu0 %v1413
    %1438 = vmatprep.subr.mxu0 0.0
    %1439 = vmatpush1.msra.mxu0 %v1414
    %1440 = vmatprep.subr.mxu0 0.0
    %1441 = vmatpush1.msra.mxu0 %v1415
    %1442 = vmatprep.subr.mxu0 0.0
    %1443 = vmatpush1.msra.mxu0 %v1416
    %1444 = vmatprep.subr.mxu0 0.0
    %1445 = vmatpush1.msra.mxu0 %v1417
    %1446 = vmatprep.subr.mxu0 0.0
    %1447 = vmatpush1.msra.mxu0 %v1418
    %1448 = vmatprep.subr.mxu0 0.0
    %1449 = vmatpush1.msra.mxu0 %v1419
    %1450 = vmatprep.subr.mxu0 0.0
    %1451 = vmatpush1.msra.mxu0 %v1420
    %1452 = vmatprep.subr.mxu0 0.0
    %1453 = vmatpush1.msra.mxu0 %v1421
    %1454 = vmatprep.subr.mxu0 0.0
    %1455 = vmatpush1.msra.mxu0 %v1422
    %1456 = vmatprep.subr.mxu0 0.0
    %1457 = vmatpush1.msra.mxu0 %v1423
    %1458 = vmatprep.subr.mxu0 0.0
    %1459 = vmatpush1.msra.mxu0 %v1424
    %1460 = vmatprep.subr.mxu0 0.0
    %1461 = vmatpush1.msra.mxu0 %v1425
    %1462 = vmatprep.subr.mxu0 0.0
    %1463 = vmatpush1.msra.mxu0 %v1426
    %1464 = vmatprep.subr.mxu0 0.0
    %1465 = vmatpush1.msra.mxu0 %v1427
    %1466 = vmatprep.subr.mxu0 0.0
    %1467 = vmatpush1.msra.mxu0 %v1428
    %1468 = vmatprep.subr.mxu0 0.0
    %1469 = vmatpush1.msra.mxu0 0.0
    %1470 = vmatprep.subr.mxu0 0.0
    %1471 = vmatpush1.msra.mxu0 0.0
    %1472 = vmatprep.subr.mxu0 0.0
    %1473 = vmatpush1.msra.mxu0 0.0
    %1474 = vmatprep.subr.mxu0 0.0
    %1475 = vmatpush1.msra.mxu0 0.0
    %1476 = vmatprep.subr.mxu0 0.0
    %1477 = vmatpush1.msra.mxu0 0.0
    %1478 = vmatprep.subr.mxu0 0.0
    %1479 = vmatpush1.msra.mxu0 0.0
    %1480 = vmatprep.subr.mxu0 0.0
    %1481 = vmatpush1.msra.mxu0 0.0
    %1482 = vmatprep.subr.mxu0 0.0
    %1483 = vmatpush1.msra.mxu0 0.0
    %1484 = vmatprep.subr.mxu0 0.0
    %1485 = vmatpush1.msra.mxu0 0.0
    %1486 = vmatprep.subr.mxu0 0.0
    %1487 = vmatpush1.msra.mxu0 0.0
    %1488 = vmatprep.subr.mxu0 0.0
    %1489 = vmatpush1.msra.mxu0 0.0
    %1490 = vmatprep.subr.mxu0 0.0
    %1491 = vmatpush1.msra.mxu0 0.0
    %1492 = vmatprep.subr.mxu0 0.0
    %1493 = vmatpush1.msra.mxu0 0.0
    %1494 = vmatprep.subr.mxu0 0.0
    %1495 = vmatpush1.msra.mxu0 0.0
    %1496 = vmatprep.subr.mxu0 0.0
    %1497 = vmatpush1.msra.mxu0 0.0
    %1498 = vmatprep.subr.mxu0 0.0
    %1499 = vmatpush1.msra.mxu0 0.0
    %1500 = vmatprep.mubr.f32.mxu0 0.0
    %1501 = vmatmul.mubr.f32.gmra.mrb[0].mxu0 %v1412
    %v1502 = vpop.f32.mrb[0].mxu0
    %v1503 = vadd.f32 %v1434, %v1502
    %v1504 = vpop.f32.mrb[0].mxu0
    %1505 = vdwg.mxu0
    %s1506 = scalar_lea.vmem [#allocation14], 128
    %v1507 = vld [vmem:[%s1506] sm:$0xff]
    %v1508 = vld [vmem:[%s1506 + $0x8] sm:$0xff]
    %v1509 = vld [vmem:[%s1506 + $0x10] sm:$0xff]
    %v1510 = vld [vmem:[%s1506 + $0x18] sm:$0xff]
    %v1511 = vld [vmem:[%s1506 + $0x20] sm:$0xff]
    %v1512 = vld [vmem:[%s1506 + $0x28] sm:$0xff]
    %v1513 = vld [vmem:[%s1506 + $0x30] sm:$0xff]
    %v1514 = vld [vmem:[%s1506 + $0x38] sm:$0xff]
    %v1515 = vld [vmem:[%s1506 + $0x40] sm:$0xff]
    %v1516 = vld [vmem:[%s1506 + $0x48] sm:$0xff]
    %v1517 = vld [vmem:[%s1506 + $0x50] sm:$0xff]
    %v1518 = vld [vmem:[%s1506 + $0x58] sm:$0xff]
    %v1519 = vld [vmem:[%s1506 + $0x60] sm:$0xff]
    %v1520 = vld [vmem:[%s1506 + $0x68] sm:$0xff]
    %v1521 = vld [vmem:[%s1506 + $0x70] sm:$0xff]
    %v1522 = vld [vmem:[%s1506 + $0x78] sm:$0xff]
    %s1523 = scalar_lea.vmem %s12, 1
    %v1524 = vld [vmem:[%s1523] sm:$0x1]
    %v1526 = vlaneseq
    %v1527 = vshrl.u32 %v1526, 7
    %v1528 = vsub.s32 0, %v1527
    %v1529 = vrot.slane %v1524, %v1528
    %1531 = vmatprep.subr.mxu0 0.0
    %1532 = vmatpush1.msra.mxu0 %v1507
    %1533 = vmatprep.subr.mxu0 0.0
    %1534 = vmatpush1.msra.mxu0 %v1508
    %1535 = vmatprep.subr.mxu0 0.0
    %1536 = vmatpush1.msra.mxu0 %v1509
    %1537 = vmatprep.subr.mxu0 0.0
    %1538 = vmatpush1.msra.mxu0 %v1510
    %1539 = vmatprep.subr.mxu0 0.0
    %1540 = vmatpush1.msra.mxu0 %v1511
    %1541 = vmatprep.subr.mxu0 0.0
    %1542 = vmatpush1.msra.mxu0 %v1512
    %1543 = vmatprep.subr.mxu0 0.0
    %1544 = vmatpush1.msra.mxu0 %v1513
    %1545 = vmatprep.subr.mxu0 0.0
    %1546 = vmatpush1.msra.mxu0 %v1514
    %1547 = vmatprep.subr.mxu0 0.0
    %1548 = vmatpush1.msra.mxu0 %v1515
    %1549 = vmatprep.subr.mxu0 0.0
    %1550 = vmatpush1.msra.mxu0 %v1516
    %1551 = vmatprep.subr.mxu0 0.0
    %1552 = vmatpush1.msra.mxu0 %v1517
    %1553 = vmatprep.subr.mxu0 0.0
    %1554 = vmatpush1.msra.mxu0 %v1518
    %1555 = vmatprep.subr.mxu0 0.0
    %1556 = vmatpush1.msra.mxu0 %v1519
    %1557 = vmatprep.subr.mxu0 0.0
    %1558 = vmatpush1.msra.mxu0 %v1520
    %1559 = vmatprep.subr.mxu0 0.0
    %1560 = vmatpush1.msra.mxu0 %v1521
    %1561 = vmatprep.subr.mxu0 0.0
    %1562 = vmatpush1.msra.mxu0 %v1522
    %1563 = vmatprep.subr.mxu0 0.0
    %1564 = vmatpush1.msra.mxu0 0.0
    %1565 = vmatprep.subr.mxu0 0.0
    %1566 = vmatpush1.msra.mxu0 0.0
    %1567 = vmatprep.subr.mxu0 0.0
    %1568 = vmatpush1.msra.mxu0 0.0
    %1569 = vmatprep.subr.mxu0 0.0
    %1570 = vmatpush1.msra.mxu0 0.0
    %1571 = vmatprep.subr.mxu0 0.0
    %1572 = vmatpush1.msra.mxu0 0.0
    %1573 = vmatprep.subr.mxu0 0.0
    %1574 = vmatpush1.msra.mxu0 0.0
    %1575 = vmatprep.subr.mxu0 0.0
    %1576 = vmatpush1.msra.mxu0 0.0
    %1577 = vmatprep.subr.mxu0 0.0
    %1578 = vmatpush1.msra.mxu0 0.0
    %1579 = vmatprep.subr.mxu0 0.0
    %1580 = vmatpush1.msra.mxu0 0.0
    %1581 = vmatprep.subr.mxu0 0.0
    %1582 = vmatpush1.msra.mxu0 0.0
    %1583 = vmatprep.subr.mxu0 0.0
    %1584 = vmatpush1.msra.mxu0 0.0
    %1585 = vmatprep.subr.mxu0 0.0
    %1586 = vmatpush1.msra.mxu0 0.0
    %1587 = vmatprep.subr.mxu0 0.0
    %1588 = vmatpush1.msra.mxu0 0.0
    %1589 = vmatprep.subr.mxu0 0.0
    %1590 = vmatpush1.msra.mxu0 0.0
    %1591 = vmatprep.subr.mxu0 0.0
    %1592 = vmatpush1.msra.mxu0 0.0
    %1593 = vmatprep.subr.mxu0 0.0
    %1594 = vmatpush1.msra.mxu0 0.0
    %1595 = vmatprep.mubr.f32.mxu0 0.0
    %1596 = vmatmul.mubr.f32.gmra.mrb[0].mxu0 %v1412
    %v1597 = vpop.f32.mrb[0].mxu0
    %v1598 = vadd.f32 %v1529, %v1597
    %v1599 = vpop.f32.mrb[0].mxu0
    %1600 = vdwg.mxu0
    %v1601 = vadd.f32 %v1598, %v1503
    %1602 = vadd.xlane.f32.xlu0 %v1503
    %v1603 = vpop.xlane.xlu0 %1602
    %v1604 = vmul.f32 %v1603, 0.33333334
    %v1605 = vsub.f32 %v1601, %v1604
    %1606 = vst [vmem:[#allocation20] sm:$0xff] %v1605
    %v1607 = vld [vmem:[%s13] sm:$0xff]
    %1608 = vmatprep.subr.mxu0 0.0
    %1609 = vmatpush1.msra.mxu0 %v890
    %1610 = vmatprep.subr.mxu0 0.0
    %1611 = vmatpush1.msra.mxu0 %v891
    %1612 = vmatprep.subr.mxu0 0.0
    %1613 = vmatpush1.msra.mxu0 %v892
    %1614 = vmatprep.subr.mxu0 0.0
    %1615 = vmatpush1.msra.mxu0 %v893
    %1616 = vmatprep.subr.mxu0 0.0
    %1617 = vmatpush1.msra.mxu0 %v894
    %1618 = vmatprep.subr.mxu0 0.0
    %1619 = vmatpush1.msra.mxu0 %v895
    %1620 = vmatprep.subr.mxu0 0.0
    %1621 = vmatpush1.msra.mxu0 %v896
    %1622 = vmatprep.subr.mxu0 0.0
    %1623 = vmatpush1.msra.mxu0 %v897
    %1624 = vmatprep.subr.mxu0 0.0
    %1625 = vmatpush1.msra.mxu0 %v898
    %1626 = vmatprep.subr.mxu0 0.0
    %1627 = vmatpush1.msra.mxu0 %v899
    %1628 = vmatprep.subr.mxu0 0.0
    %1629 = vmatpush1.msra.mxu0 %v900
    %1630 = vmatprep.subr.mxu0 0.0
    %1631 = vmatpush1.msra.mxu0 %v901
    %1632 = vmatprep.subr.mxu0 0.0
    %1633 = vmatpush1.msra.mxu0 %v902
    %1634 = vmatprep.subr.mxu0 0.0
    %1635 = vmatpush1.msra.mxu0 %v903
    %1636 = vmatprep.subr.mxu0 0.0
    %1637 = vmatpush1.msra.mxu0 %v904
    %1638 = vmatprep.subr.mxu0 0.0
    %1639 = vmatpush1.msra.mxu0 %v905
    %1640 = vmatprep.subr.mxu0 0.0
    %1641 = vmatpush1.msra.mxu0 0.0
    %1642 = vmatprep.subr.mxu0 0.0
    %1643 = vmatpush1.msra.mxu0 0.0
    %1644 = vmatprep.subr.mxu0 0.0
    %1645 = vmatpush1.msra.mxu0 0.0
    %1646 = vmatprep.subr.mxu0 0.0
    %1647 = vmatpush1.msra.mxu0 0.0
    %1648 = vmatprep.subr.mxu0 0.0
    %1649 = vmatpush1.msra.mxu0 0.0
    %1650 = vmatprep.subr.mxu0 0.0
    %1651 = vmatpush1.msra.mxu0 0.0
    %1652 = vmatprep.subr.mxu0 0.0
    %1653 = vmatpush1.msra.mxu0 0.0
    %1654 = vmatprep.subr.mxu0 0.0
    %1655 = vmatpush1.msra.mxu0 0.0
    %1656 = vmatprep.subr.mxu0 0.0
    %1657 = vmatpush1.msra.mxu0 0.0
    %1658 = vmatprep.subr.mxu0 0.0
    %1659 = vmatpush1.msra.mxu0 0.0
    %1660 = vmatprep.subr.mxu0 0.0
    %1661 = vmatpush1.msra.mxu0 0.0
    %1662 = vmatprep.subr.mxu0 0.0
    %1663 = vmatpush1.msra.mxu0 0.0
    %1664 = vmatprep.subr.mxu0 0.0
    %1665 = vmatpush1.msra.mxu0 0.0
    %1666 = vmatprep.subr.mxu0 0.0
    %1667 = vmatpush1.msra.mxu0 0.0
    %1668 = vmatprep.subr.mxu0 0.0
    %1669 = vmatpush1.msra.mxu0 0.0
    %1670 = vmatprep.subr.mxu0 0.0
    %1671 = vmatpush1.msra.mxu0 0.0
    %1672 = vmatprep.mubr.f32.mxu0 0.0
    %1673 = vmatmul.mubr.f32.gmra.mrb[0].mxu0 %v1607
    %v1674 = vpop.f32.mrb[0].mxu0
    %v1675 = vadd.f32 0.0, %v1674
    %v1676 = vpop.f32.mrb[0].mxu0
    %1677 = vdwg.mxu0
    %v1678 = vld [vmem:[#allocation16] sm:$0xff]
    %v1679 = vld [vmem:[#allocation16 + $0x8] sm:$0xff]
    %v1680 = vld [vmem:[#allocation16 + $0x10] sm:$0xff]
    %v1681 = vld [vmem:[#allocation16 + $0x18] sm:$0xff]
    %v1682 = vld [vmem:[#allocation16 + $0x20] sm:$0xff]
    %v1683 = vld [vmem:[#allocation16 + $0x28] sm:$0xff]
    %v1684 = vld [vmem:[#allocation16 + $0x30] sm:$0xff]
    %v1685 = vld [vmem:[#allocation16 + $0x38] sm:$0xff]
    %v1686 = vld [vmem:[#allocation16 + $0x40] sm:$0xff]
    %v1687 = vld [vmem:[#allocation16 + $0x48] sm:$0xff]
    %v1688 = vld [vmem:[#allocation16 + $0x50] sm:$0xff]
    %v1689 = vld [vmem:[#allocation16 + $0x58] sm:$0xff]
    %v1690 = vld [vmem:[#allocation16 + $0x60] sm:$0xff]
    %v1691 = vld [vmem:[#allocation16 + $0x68] sm:$0xff]
    %v1692 = vld [vmem:[#allocation16 + $0x70] sm:$0xff]
    %v1693 = vld [vmem:[#allocation16 + $0x78] sm:$0xff]
    %v1694 = vld [vmem:[%s15] sm:$0x1]
    %v1696 = vlaneseq
    %v1697 = vshrl.u32 %v1696, 7
    %v1698 = vsub.s32 0, %v1697
    %v1699 = vrot.slane %v1694, %v1698
    %1701 = vmatprep.subr.mxu0 0.0
    %1702 = vmatpush1.msra.mxu0 %v1678
    %1703 = vmatprep.subr.mxu0 0.0
    %1704 = vmatpush1.msra.mxu0 %v1679
    %1705 = vmatprep.subr.mxu0 0.0
    %1706 = vmatpush1.msra.mxu0 %v1680
    %1707 = vmatprep.subr.mxu0 0.0
    %1708 = vmatpush1.msra.mxu0 %v1681
    %1709 = vmatprep.subr.mxu0 0.0
    %1710 = vmatpush1.msra.mxu0 %v1682
    %1711 = vmatprep.subr.mxu0 0.0
    %1712 = vmatpush1.msra.mxu0 %v1683
    %1713 = vmatprep.subr.mxu0 0.0
    %1714 = vmatpush1.msra.mxu0 %v1684
    %1715 = vmatprep.subr.mxu0 0.0
    %1716 = vmatpush1.msra.mxu0 %v1685
    %1717 = vmatprep.subr.mxu0 0.0
    %1718 = vmatpush1.msra.mxu0 %v1686
    %1719 = vmatprep.subr.mxu0 0.0
    %1720 = vmatpush1.msra.mxu0 %v1687
    %1721 = vmatprep.subr.mxu0 0.0
    %1722 = vmatpush1.msra.mxu0 %v1688
    %1723 = vmatprep.subr.mxu0 0.0
    %1724 = vmatpush1.msra.mxu0 %v1689
    %1725 = vmatprep.subr.mxu0 0.0
    %1726 = vmatpush1.msra.mxu0 %v1690
    %1727 = vmatprep.subr.mxu0 0.0
    %1728 = vmatpush1.msra.mxu0 %v1691
    %1729 = vmatprep.subr.mxu0 0.0
    %1730 = vmatpush1.msra.mxu0 %v1692
    %1731 = vmatprep.subr.mxu0 0.0
    %1732 = vmatpush1.msra.mxu0 %v1693
    %1733 = vmatprep.subr.mxu0 0.0
    %1734 = vmatpush1.msra.mxu0 0.0
    %1735 = vmatprep.subr.mxu0 0.0
    %1736 = vmatpush1.msra.mxu0 0.0
    %1737 = vmatprep.subr.mxu0 0.0
    %1738 = vmatpush1.msra.mxu0 0.0
    %1739 = vmatprep.subr.mxu0 0.0
    %1740 = vmatpush1.msra.mxu0 0.0
    %1741 = vmatprep.subr.mxu0 0.0
    %1742 = vmatpush1.msra.mxu0 0.0
    %1743 = vmatprep.subr.mxu0 0.0
    %1744 = vmatpush1.msra.mxu0 0.0
    %1745 = vmatprep.subr.mxu0 0.0
    %1746 = vmatpush1.msra.mxu0 0.0
    %1747 = vmatprep.subr.mxu0 0.0
    %1748 = vmatpush1.msra.mxu0 0.0
    %1749 = vmatprep.subr.mxu0 0.0
    %1750 = vmatpush1.msra.mxu0 0.0
    %1751 = vmatprep.subr.mxu0 0.0
    %1752 = vmatpush1.msra.mxu0 0.0
    %1753 = vmatprep.subr.mxu0 0.0
    %1754 = vmatpush1.msra.mxu0 0.0
    %1755 = vmatprep.subr.mxu0 0.0
    %1756 = vmatpush1.msra.mxu0 0.0
    %1757 = vmatprep.subr.mxu0 0.0
    %1758 = vmatpush1.msra.mxu0 0.0
    %1759 = vmatprep.subr.mxu0 0.0
    %1760 = vmatpush1.msra.mxu0 0.0
    %1761 = vmatprep.subr.mxu0 0.0
    %1762 = vmatpush1.msra.mxu0 0.0
    %1763 = vmatprep.subr.mxu0 0.0
    %1764 = vmatpush1.msra.mxu0 0.0
    %1765 = vmatprep.mubr.f32.mxu0 0.0
    %1766 = vmatmul.mubr.f32.gmra.mrb[0].mxu0 %v1675
    %v1767 = vpop.f32.mrb[0].mxu0
    %v1768 = vadd.f32 %v1699, %v1767
    %v1769 = vpop.f32.mrb[0].mxu0
    %1770 = vdwg.mxu0
    %v1771 = vmax.f32 %v1768, 0.0
    %v1772 = vld [vmem:[#allocation17] sm:$0xff]
    %v1773 = vld [vmem:[#allocation17 + $0x8] sm:$0xff]
    %v1774 = vld [vmem:[#allocation17 + $0x10] sm:$0xff]
    %v1775 = vld [vmem:[#allocation17 + $0x18] sm:$0xff]
    %v1776 = vld [vmem:[#allocation17 + $0x20] sm:$0xff]
    %v1777 = vld [vmem:[#allocation17 + $0x28] sm:$0xff]
    %v1778 = vld [vmem:[#allocation17 + $0x30] sm:$0xff]
    %v1779 = vld [vmem:[#allocation17 + $0x38] sm:$0xff]
    %v1780 = vld [vmem:[#allocation17 + $0x40] sm:$0xff]
    %v1781 = vld [vmem:[#allocation17 + $0x48] sm:$0xff]
    %v1782 = vld [vmem:[#allocation17 + $0x50] sm:$0xff]
    %v1783 = vld [vmem:[#allocation17 + $0x58] sm:$0xff]
    %v1784 = vld [vmem:[#allocation17 + $0x60] sm:$0xff]
    %v1785 = vld [vmem:[#allocation17 + $0x68] sm:$0xff]
    %v1786 = vld [vmem:[#allocation17 + $0x70] sm:$0xff]
    %v1787 = vld [vmem:[#allocation17 + $0x78] sm:$0xff]
    %v1788 = vld [vmem:[%s17] sm:$0x1]
    %v1790 = vlaneseq
    %v1791 = vshrl.u32 %v1790, 7
    %v1792 = vsub.s32 0, %v1791
    %v1793 = vrot.slane %v1788, %v1792
    %1795 = vmatprep.subr.mxu0 0.0
    %1796 = vmatpush1.msra.mxu0 %v1772
    %1797 = vmatprep.subr.mxu0 0.0
    %1798 = vmatpush1.msra.mxu0 %v1773
    %1799 = vmatprep.subr.mxu0 0.0
    %1800 = vmatpush1.msra.mxu0 %v1774
    %1801 = vmatprep.subr.mxu0 0.0
    %1802 = vmatpush1.msra.mxu0 %v1775
    %1803 = vmatprep.subr.mxu0 0.0
    %1804 = vmatpush1.msra.mxu0 %v1776
    %1805 = vmatprep.subr.mxu0 0.0
    %1806 = vmatpush1.msra.mxu0 %v1777
    %1807 = vmatprep.subr.mxu0 0.0
    %1808 = vmatpush1.msra.mxu0 %v1778
    %1809 = vmatprep.subr.mxu0 0.0
    %1810 = vmatpush1.msra.mxu0 %v1779
    %1811 = vmatprep.subr.mxu0 0.0
    %1812 = vmatpush1.msra.mxu0 %v1780
    %1813 = vmatprep.subr.mxu0 0.0
    %1814 = vmatpush1.msra.mxu0 %v1781
    %1815 = vmatprep.subr.mxu0 0.0
    %1816 = vmatpush1.msra.mxu0 %v1782
    %1817 = vmatprep.subr.mxu0 0.0
    %1818 = vmatpush1.msra.mxu0 %v1783
    %1819 = vmatprep.subr.mxu0 0.0
    %1820 = vmatpush1.msra.mxu0 %v1784
    %1821 = vmatprep.subr.mxu0 0.0
    %1822 = vmatpush1.msra.mxu0 %v1785
    %1823 = vmatprep.subr.mxu0 0.0
    %1824 = vmatpush1.msra.mxu0 %v1786
    %1825 = vmatprep.subr.mxu0 0.0
    %1826 = vmatpush1.msra.mxu0 %v1787
    %1827 = vmatprep.subr.mxu0 0.0
    %1828 = vmatpush1.msra.mxu0 0.0
    %1829 = vmatprep.subr.mxu0 0.0
    %1830 = vmatpush1.msra.mxu0 0.0
    %1831 = vmatprep.subr.mxu0 0.0
    %1832 = vmatpush1.msra.mxu0 0.0
    %1833 = vmatprep.subr.mxu0 0.0
    %1834 = vmatpush1.msra.mxu0 0.0
    %1835 = vmatprep.subr.mxu0 0.0
    %1836 = vmatpush1.msra.mxu0 0.0
    %1837 = vmatprep.subr.mxu0 0.0
    %1838 = vmatpush1.msra.mxu0 0.0
    %1839 = vmatprep.subr.mxu0 0.0
    %1840 = vmatpush1.msra.mxu0 0.0
    %1841 = vmatprep.subr.mxu0 0.0
    %1842 = vmatpush1.msra.mxu0 0.0
    %1843 = vmatprep.subr.mxu0 0.0
    %1844 = vmatpush1.msra.mxu0 0.0
    %1845 = vmatprep.subr.mxu0 0.0
    %1846 = vmatpush1.msra.mxu0 0.0
    %1847 = vmatprep.subr.mxu0 0.0
    %1848 = vmatpush1.msra.mxu0 0.0
    %1849 = vmatprep.subr.mxu0 0.0
    %1850 = vmatpush1.msra.mxu0 0.0
    %1851 = vmatprep.subr.mxu0 0.0
    %1852 = vmatpush1.msra.mxu0 0.0
    %1853 = vmatprep.subr.mxu0 0.0
    %1854 = vmatpush1.msra.mxu0 0.0
    %1855 = vmatprep.subr.mxu0 0.0
    %1856 = vmatpush1.msra.mxu0 0.0
    %1857 = vmatprep.subr.mxu0 0.0
    %1858 = vmatpush1.msra.mxu0 0.0
    %1859 = vmatprep.mubr.f32.mxu0 0.0
    %1860 = vmatmul.mubr.f32.gmra.mrb[0].mxu0 %v1771
    %v1861 = vpop.f32.mrb[0].mxu0
    %v1862 = vadd.f32 %v1793, %v1861
    %v1863 = vpop.f32.mrb[0].mxu0
    %1864 = vdwg.mxu0
    %v1865 = vmax.f32 %v1862, 0.0
    %v1866 = vld [vmem:[#allocation19] sm:$0xff]
    %v1867 = vld [vmem:[#allocation19 + $0x8] sm:$0xff]
    %v1868 = vld [vmem:[#allocation19 + $0x10] sm:$0xff]
    %v1869 = vld [vmem:[#allocation19 + $0x18] sm:$0xff]
    %v1870 = vld [vmem:[#allocation19 + $0x20] sm:$0xff]
    %v1871 = vld [vmem:[#allocation19 + $0x28] sm:$0xff]
    %v1872 = vld [vmem:[#allocation19 + $0x30] sm:$0xff]
    %v1873 = vld [vmem:[#allocation19 + $0x38] sm:$0xff]
    %v1874 = vld [vmem:[#allocation19 + $0x40] sm:$0xff]
    %v1875 = vld [vmem:[#allocation19 + $0x48] sm:$0xff]
    %v1876 = vld [vmem:[#allocation19 + $0x50] sm:$0xff]
    %v1877 = vld [vmem:[#allocation19 + $0x58] sm:$0xff]
    %v1878 = vld [vmem:[#allocation19 + $0x60] sm:$0xff]
    %v1879 = vld [vmem:[#allocation19 + $0x68] sm:$0xff]
    %v1880 = vld [vmem:[#allocation19 + $0x70] sm:$0xff]
    %v1881 = vld [vmem:[#allocation19 + $0x78] sm:$0xff]
    %v1882 = vld [vmem:[%s19] sm:$0x1]
    %v1884 = vlaneseq
    %v1885 = vshrl.u32 %v1884, 7
    %v1886 = vsub.s32 0, %v1885
    %v1887 = vrot.slane %v1882, %v1886
    %1889 = vmatprep.subr.mxu0 0.0
    %1890 = vmatpush1.msra.mxu0 %v1866
    %1891 = vmatprep.subr.mxu0 0.0
    %1892 = vmatpush1.msra.mxu0 %v1867
    %1893 = vmatprep.subr.mxu0 0.0
    %1894 = vmatpush1.msra.mxu0 %v1868
    %1895 = vmatprep.subr.mxu0 0.0
    %1896 = vmatpush1.msra.mxu0 %v1869
    %1897 = vmatprep.subr.mxu0 0.0
    %1898 = vmatpush1.msra.mxu0 %v1870
    %1899 = vmatprep.subr.mxu0 0.0
    %1900 = vmatpush1.msra.mxu0 %v1871
    %1901 = vmatprep.subr.mxu0 0.0
    %1902 = vmatpush1.msra.mxu0 %v1872
    %1903 = vmatprep.subr.mxu0 0.0
    %1904 = vmatpush1.msra.mxu0 %v1873
    %1905 = vmatprep.subr.mxu0 0.0
    %1906 = vmatpush1.msra.mxu0 %v1874
    %1907 = vmatprep.subr.mxu0 0.0
    %1908 = vmatpush1.msra.mxu0 %v1875
    %1909 = vmatprep.subr.mxu0 0.0
    %1910 = vmatpush1.msra.mxu0 %v1876
    %1911 = vmatprep.subr.mxu0 0.0
    %1912 = vmatpush1.msra.mxu0 %v1877
    %1913 = vmatprep.subr.mxu0 0.0
    %1914 = vmatpush1.msra.mxu0 %v1878
    %1915 = vmatprep.subr.mxu0 0.0
    %1916 = vmatpush1.msra.mxu0 %v1879
    %1917 = vmatprep.subr.mxu0 0.0
    %1918 = vmatpush1.msra.mxu0 %v1880
    %1919 = vmatprep.subr.mxu0 0.0
    %1920 = vmatpush1.msra.mxu0 %v1881
    %1921 = vmatprep.subr.mxu0 0.0
    %1922 = vmatpush1.msra.mxu0 0.0
    %1923 = vmatprep.subr.mxu0 0.0
    %1924 = vmatpush1.msra.mxu0 0.0
    %1925 = vmatprep.subr.mxu0 0.0
    %1926 = vmatpush1.msra.mxu0 0.0
    %1927 = vmatprep.subr.mxu0 0.0
    %1928 = vmatpush1.msra.mxu0 0.0
    %1929 = vmatprep.subr.mxu0 0.0
    %1930 = vmatpush1.msra.mxu0 0.0
    %1931 = vmatprep.subr.mxu0 0.0
    %1932 = vmatpush1.msra.mxu0 0.0
    %1933 = vmatprep.subr.mxu0 0.0
    %1934 = vmatpush1.msra.mxu0 0.0
    %1935 = vmatprep.subr.mxu0 0.0
    %1936 = vmatpush1.msra.mxu0 0.0
    %1937 = vmatprep.subr.mxu0 0.0
    %1938 = vmatpush1.msra.mxu0 0.0
    %1939 = vmatprep.subr.mxu0 0.0
    %1940 = vmatpush1.msra.mxu0 0.0
    %1941 = vmatprep.subr.mxu0 0.0
    %1942 = vmatpush1.msra.mxu0 0.0
    %1943 = vmatprep.subr.mxu0 0.0
    %1944 = vmatpush1.msra.mxu0 0.0
    %1945 = vmatprep.subr.mxu0 0.0
    %1946 = vmatpush1.msra.mxu0 0.0
    %1947 = vmatprep.subr.mxu0 0.0
    %1948 = vmatpush1.msra.mxu0 0.0
    %1949 = vmatprep.subr.mxu0 0.0
    %1950 = vmatpush1.msra.mxu0 0.0
    %1951 = vmatprep.subr.mxu0 0.0
    %1952 = vmatpush1.msra.mxu0 0.0
    %1953 = vmatprep.mubr.f32.mxu0 0.0
    %1954 = vmatmul.mubr.f32.gmra.mrb[0].mxu0 %v1865
    %v1955 = vpop.f32.mrb[0].mxu0
    %v1956 = vadd.f32 %v1887, %v1955
    %v1957 = vpop.f32.mrb[0].mxu0
    %1958 = vdwg.mxu0
    %s1959 = scalar_lea.vmem [#allocation19], 128
    %v1960 = vld [vmem:[%s1959] sm:$0xff]
    %v1961 = vld [vmem:[%s1959 + $0x8] sm:$0xff]
    %v1962 = vld [vmem:[%s1959 + $0x10] sm:$0xff]
    %v1963 = vld [vmem:[%s1959 + $0x18] sm:$0xff]
    %v1964 = vld [vmem:[%s1959 + $0x20] sm:$0xff]
    %v1965 = vld [vmem:[%s1959 + $0x28] sm:$0xff]
    %v1966 = vld [vmem:[%s1959 + $0x30] sm:$0xff]
    %v1967 = vld [vmem:[%s1959 + $0x38] sm:$0xff]
    %v1968 = vld [vmem:[%s1959 + $0x40] sm:$0xff]
    %v1969 = vld [vmem:[%s1959 + $0x48] sm:$0xff]
    %v1970 = vld [vmem:[%s1959 + $0x50] sm:$0xff]
    %v1971 = vld [vmem:[%s1959 + $0x58] sm:$0xff]
    %v1972 = vld [vmem:[%s1959 + $0x60] sm:$0xff]
    %v1973 = vld [vmem:[%s1959 + $0x68] sm:$0xff]
    %v1974 = vld [vmem:[%s1959 + $0x70] sm:$0xff]
    %v1975 = vld [vmem:[%s1959 + $0x78] sm:$0xff]
    %s1976 = scalar_lea.vmem %s19, 1
    %v1977 = vld [vmem:[%s1976] sm:$0x1]
    %v1979 = vlaneseq
    %v1980 = vshrl.u32 %v1979, 7
    %v1981 = vsub.s32 0, %v1980
    %v1982 = vrot.slane %v1977, %v1981
    %1984 = vmatprep.subr.mxu0 0.0
    %1985 = vmatpush1.msra.mxu0 %v1960
    %1986 = vmatprep.subr.mxu0 0.0
    %1987 = vmatpush1.msra.mxu0 %v1961
    %1988 = vmatprep.subr.mxu0 0.0
    %1989 = vmatpush1.msra.mxu0 %v1962
    %1990 = vmatprep.subr.mxu0 0.0
    %1991 = vmatpush1.msra.mxu0 %v1963
    %1992 = vmatprep.subr.mxu0 0.0
    %1993 = vmatpush1.msra.mxu0 %v1964
    %1994 = vmatprep.subr.mxu0 0.0
    %1995 = vmatpush1.msra.mxu0 %v1965
    %1996 = vmatprep.subr.mxu0 0.0
    %1997 = vmatpush1.msra.mxu0 %v1966
    %1998 = vmatprep.subr.mxu0 0.0
    %1999 = vmatpush1.msra.mxu0 %v1967
    %2000 = vmatprep.subr.mxu0 0.0
    %2001 = vmatpush1.msra.mxu0 %v1968
    %2002 = vmatprep.subr.mxu0 0.0
    %2003 = vmatpush1.msra.mxu0 %v1969
    %2004 = vmatprep.subr.mxu0 0.0
    %2005 = vmatpush1.msra.mxu0 %v1970
    %2006 = vmatprep.subr.mxu0 0.0
    %2007 = vmatpush1.msra.mxu0 %v1971
    %2008 = vmatprep.subr.mxu0 0.0
    %2009 = vmatpush1.msra.mxu0 %v1972
    %2010 = vmatprep.subr.mxu0 0.0
    %2011 = vmatpush1.msra.mxu0 %v1973
    %2012 = vmatprep.subr.mxu0 0.0
    %2013 = vmatpush1.msra.mxu0 %v1974
    %2014 = vmatprep.subr.mxu0 0.0
    %2015 = vmatpush1.msra.mxu0 %v1975
    %2016 = vmatprep.subr.mxu0 0.0
    %2017 = vmatpush1.msra.mxu0 0.0
    %2018 = vmatprep.subr.mxu0 0.0
    %2019 = vmatpush1.msra.mxu0 0.0
    %2020 = vmatprep.subr.mxu0 0.0
    %2021 = vmatpush1.msra.mxu0 0.0
    %2022 = vmatprep.subr.mxu0 0.0
    %2023 = vmatpush1.msra.mxu0 0.0
    %2024 = vmatprep.subr.mxu0 0.0
    %2025 = vmatpush1.msra.mxu0 0.0
    %2026 = vmatprep.subr.mxu0 0.0
    %2027 = vmatpush1.msra.mxu0 0.0
    %2028 = vmatprep.subr.mxu0 0.0
    %2029 = vmatpush1.msra.mxu0 0.0
    %2030 = vmatprep.subr.mxu0 0.0
    %2031 = vmatpush1.msra.mxu0 0.0
    %2032 = vmatprep.subr.mxu0 0.0
    %2033 = vmatpush1.msra.mxu0 0.0
    %2034 = vmatprep.subr.mxu0 0.0
    %2035 = vmatpush1.msra.mxu0 0.0
    %2036 = vmatprep.subr.mxu0 0.0
    %2037 = vmatpush1.msra.mxu0 0.0
    %2038 = vmatprep.subr.mxu0 0.0
    %2039 = vmatpush1.msra.mxu0 0.0
    %2040 = vmatprep.subr.mxu0 0.0
    %2041 = vmatpush1.msra.mxu0 0.0
    %2042 = vmatprep.subr.mxu0 0.0
    %2043 = vmatpush1.msra.mxu0 0.0
    %2044 = vmatprep.subr.mxu0 0.0
    %2045 = vmatpush1.msra.mxu0 0.0
    %2046 = vmatprep.subr.mxu0 0.0
    %2047 = vmatpush1.msra.mxu0 0.0
    %2048 = vmatprep.mubr.f32.mxu0 0.0
    %2049 = vmatmul.mubr.f32.gmra.mrb[0].mxu0 %v1865
    %v2050 = vpop.f32.mrb[0].mxu0
    %v2051 = vadd.f32 %v1982, %v2050
    %v2052 = vpop.f32.mrb[0].mxu0
    %2053 = vdwg.mxu0
    %v2054 = vadd.f32 %v2051, %v1956
    %2055 = vadd.xlane.f32.xlu0 %v1956
    %v2056 = vpop.xlane.xlu0 %2055
    %v2057 = vmul.f32 %v2056, 0.2
    %v2058 = vsub.f32 %v2054, %v2057
    %2059 = vst [vmem:[#allocation21] sm:$0xff] %v2058
    // Predicated region
    $region126: #{_fused_gnn_call.1} parent=1 // pred_check
      _
    $region127: #{_fused_gnn_call.1} parent=1 // pred_check_branch
      %2061 = sbr.rel (0) target = $region129
    $region128: #{_fused_gnn_call.1} parent=1 // pred_region
      %s2063 = ssub.s32 128, 128
      %2064 = vsyncadd [#allocation4], %s2063
      %s2066 = sshll.u32 [#allocation20], 4
      %s2067 = int_to_ptr.vmem [resolvable:$true] %s2066
      %2069 = dma.vmem_to_hbm [thread:$0]  %s2067, 128, %s20, [#allocation4]
    $region129: #{_fused_gnn_call.1} parent=1 // pred_fallthru
      _
    // Predicated region
    $region130: #{_fused_gnn_call.1} parent=1 // pred_check
      _
    $region131: #{_fused_gnn_call.1} parent=1 // pred_check_branch
      %2071 = sbr.rel (0) target = $region133
    $region132: #{_fused_gnn_call.1} parent=1 // pred_region
      %s2073 = ssub.s32 128, 128
      %2074 = vsyncadd [#allocation22], %s2073
      %s2076 = sshll.u32 [#allocation21], 4
      %s2077 = int_to_ptr.vmem [resolvable:$true] %s2076
      %2079 = dma.vmem_to_hbm [thread:$0]  %s2077, 128, %s21, [#allocation22]
    $region133: #{_fused_gnn_call.1} parent=1 // pred_fallthru
      _
    // Predicated region
    $region134: #{_fused_gnn_call.1} parent=1 // pred_check
      _
    $region135: #{_fused_gnn_call.1} parent=1 // pred_check_branch
      %2081 = sbr.rel (0) target = $region137
    $region136: #{_fused_gnn_call.1} parent=1 // pred_region
      %2082 = dma.done [#allocation4], 128
    $region137: #{_fused_gnn_call.1} parent=1 // pred_fallthru
      _
    // Predicated region
    $region138: #{_fused_gnn_call.1} parent=1 // pred_check
      _
    $region139: #{_fused_gnn_call.1} parent=1 // pred_check_branch
      %2084 = sbr.rel (0) target = $region141
    $region140: #{_fused_gnn_call.1} parent=1 // pred_region
      %2085 = dma.done [#allocation22], 128
    $region141: #{_fused_gnn_call.1} parent=1 // pred_fallthru
      _
    %2086 = vsyncpa [#allocation3], 1
    %2087 = vsyncpa [#allocation6], 1
    %2088 = vsyncpa [#allocation9], 1
    %2089 = vsyncpa [#allocation12], 1
    %2090 = vsyncpa [#allocation15], 1
    %2091 = vsyncpa [#allocation18], 1
    %2092 = vsyncpa [#allocation4], 1
    %2093 = vsyncpa [#allocation22], 1

</llo_original>
